<compile_context>
chip_gen: v6e
topology: v6e:2x2x1
jax: 0.10.0
libtpu: 0.0.40
codegen_flags: <defaults>
</compile_context>

<pallas_src>
import functools

import jax
import jax.numpy as jnp
from jax.experimental import pallas as pl
from jax.experimental.pallas import tpu as pltpu


# --------------------------------------------------------------------------
# Pallas kernels
# --------------------------------------------------------------------------

def _stem_expand_kernel(p_ref, sw_ref, sb_ref, ew_ref, eb_ref, o_ref):
    """Fused conv_stem(3x3 as matmul on patches)+BN+SiLU -> expand 1x1+BN+SiLU.
    The 48-wide stem output stays in VMEM; bf16 stored to HBM."""
    y = jnp.dot(p_ref[...], sw_ref[...],
                preferred_element_type=jnp.float32) + sb_ref[...]
    y = y * jax.nn.sigmoid(y)                              # SiLU (f32)
    z = jnp.dot(y.astype(jnp.bfloat16), ew_ref[...],
                preferred_element_type=jnp.float32) + eb_ref[...]
    z = z * jax.nn.sigmoid(z)
    o_ref[...] = z.astype(o_ref.dtype)                     # bf16 intermediate


def _dw_pool_se_kernel(p_ref, w_ref, b_ref, srw_ref, srb_ref, sew_ref, seb_ref,
                       d_ref, g_ref, acc_ref, *, inv_rows):
    """Depthwise 3x3 conv (tap-leading patches) + folded BN + SiLU, fused with
    per-image global average pool and the squeeze-excite MLP.
    Grid = (batch ['parallel' OUTER], row-tiles ['arbitrary' INNER]).
    p: (9, tr, C) bf16, w: (9, 1, C) f32, b: (1, C) f32.
    Outputs: d (tr, C) bf16 per tile; gate (1, C) f32 per image (finalize)."""
    i = pl.program_id(1)

    @pl.when(i == 0)
    def _():
        acc_ref[...] = jnp.zeros_like(acc_ref)

    acc = p_ref[0].astype(jnp.float32) * w_ref[0]
    for t in range(1, 9):                                  # unrolled VPU FMAs
        acc = acc + p_ref[t].astype(jnp.float32) * w_ref[t]
    y = acc + b_ref[...]
    y = y * jax.nn.sigmoid(y)                              # SiLU (f32)
    d_ref[...] = y.astype(d_ref.dtype)                     # bf16 intermediate
    acc_ref[...] += jnp.sum(y, axis=0, keepdims=True)

    @pl.when(i == pl.num_programs(1) - 1)
    def _():
        pooled = (acc_ref[...] * inv_rows).astype(jnp.bfloat16)       # (1, C)
        h1 = jnp.dot(pooled, srw_ref[...],
                     preferred_element_type=jnp.float32) + srb_ref[...]
        h1 = h1 * jax.nn.sigmoid(h1)
        g = jnp.dot(h1.astype(jnp.bfloat16), sew_ref[...],
                    preferred_element_type=jnp.float32) + seb_ref[...]
        g_ref[...] = jax.nn.sigmoid(g)


def _proj_head_pool_kernel(d_ref, g_ref, pw_ref, pb_ref, hw_ref, hb_ref,
                           o_ref, acc_ref, *, inv_rows):
    """Fused: (d * SE-gate) @ proj_w + pb  ->  @ head_w + hb -> SiLU
    -> global average pool accumulated across the row-tile grid axis.
    Grid = (batch ['parallel' OUTER], row-tiles ['arbitrary' INNER])."""
    i = pl.program_id(1)

    @pl.when(i == 0)
    def _():
        acc_ref[...] = jnp.zeros_like(acc_ref)

    x = (d_ref[0].astype(jnp.float32) * g_ref[...]).astype(jnp.bfloat16)  # (tr,C)
    y = jnp.dot(x, pw_ref[...],
                preferred_element_type=jnp.float32) + pb_ref[...]
    z = jnp.dot(y.astype(jnp.bfloat16), hw_ref[...],
                preferred_element_type=jnp.float32) + hb_ref[...]
    z = z * jax.nn.sigmoid(z)                              # conv_head SiLU
    acc_ref[...] += jnp.sum(z, axis=0, keepdims=True)

    @pl.when(i == pl.num_programs(1) - 1)
    def _():
        o_ref[...] = acc_ref[...] * inv_rows


def _heads_kernel(x_ref, w1_ref, b1_ref, w2_ref, b2_ref, w3_ref, b3_ref, o_ref):
    """One classification head per grid step (grid over the 3 heads, parallel).
    Logits written into a lane-dense (B, 128) column of the (B, 3*128) slab."""
    x = x_ref[...].astype(jnp.bfloat16)
    y1 = jnp.dot(x, w1_ref[0], preferred_element_type=jnp.float32) + b1_ref[0]
    y1 = jnp.where(y1 > 0, y1, 0.01 * y1)                  # LeakyReLU(0.01)
    # Dropout(0.2) is identity in eval mode.
    y2 = jnp.dot(y1.astype(jnp.bfloat16), w2_ref[0],
                 preferred_element_type=jnp.float32) + b2_ref[0]
    y2 = jnp.where(y2 > 0, y2, 0.01 * y2)
    y3 = jnp.dot(y2.astype(jnp.bfloat16), w3_ref[0],
                 preferred_element_type=jnp.float32) + b3_ref[0]
    o_ref[...] = y3


# --------------------------------------------------------------------------
# Wrappers around pallas_call
# --------------------------------------------------------------------------

def _row_tile(m, cap=512):
    """Largest tile <= cap that divides m exactly; fall back to the full extent
    (always a legal block).  No padding copies are ever made."""
    for t in (512, 256, 128, 64, 32, 16, 8):
        if t <= cap and m % t == 0:
            return t
    return m


def _const_spec(shape):
    """BlockSpec for a grid-invariant operand; single-buffered when the
    installed JAX supports pipeline_mode (saves resident-weight VMEM)."""
    idx = lambda *_: (0,) * len(shape)
    try:
        return pl.BlockSpec(shape, idx, pipeline_mode=pl.Buffered(1))
    except (TypeError, AttributeError, ValueError):
        return pl.BlockSpec(shape, idx)


def pallas_stem_expand(pat, stem_w, stem_b, exp_w, exp_b):
    """Fused conv_stem + expand 1x1; bf16 in, bf16 out, f32 accumulate."""
    m, k = pat.shape
    n1 = stem_w.shape[1]
    n2 = exp_w.shape[1]
    tm = _row_tile(m)
    return pl.pallas_call(
        _stem_expand_kernel,
        out_shape=jax.ShapeDtypeStruct((m, n2), jnp.bfloat16),
        grid=(m // tm,),
        in_specs=[
            pl.BlockSpec((tm, k), lambda i: (i, 0)),
            pl.BlockSpec((k, n1), lambda i: (0, 0)),
            pl.BlockSpec((1, n1), lambda i: (0, 0)),
            pl.BlockSpec((n1, n2), lambda i: (0, 0)),
            pl.BlockSpec((1, n2), lambda i: (0, 0)),
        ],
        out_specs=pl.BlockSpec((tm, n2), lambda i: (i, 0)),
        compiler_params=pltpu.CompilerParams(dimension_semantics=("parallel",)),
    )(pat, stem_w, stem_b.reshape(1, n1), exp_w, exp_b.reshape(1, n2))


def pallas_dwconv_pool_se(patches, dw_w, dw_b, se_r_w, se_r_b, se_e_w, se_e_b,
                          batch, rows):
    """Depthwise conv (+BN+SiLU) fused with global-average-pool and SE MLP.
    patches: (9, batch*rows, C) bf16 -> d (batch*rows, C) bf16, gate (batch, C) f32."""
    kk, m, c = patches.shape
    assert m == batch * rows
    tr = _row_tile(rows)
    n_tiles = rows // tr
    rdim = se_r_w.shape[1]

    d, gate = pl.pallas_call(
        functools.partial(_dw_pool_se_kernel, inv_rows=1.0 / float(rows)),
        out_shape=(jax.ShapeDtypeStruct((m, c), jnp.bfloat16),
                   jax.ShapeDtypeStruct((batch, c), jnp.float32)),
        grid=(batch, n_tiles),
        in_specs=[
            pl.BlockSpec((kk, tr, c), lambda bb, i: (0, bb * n_tiles + i, 0)),
            pl.BlockSpec((kk, 1, c), lambda bb, i: (0, 0, 0)),
            pl.BlockSpec((1, c), lambda bb, i: (0, 0)),
            pl.BlockSpec((c, rdim), lambda bb, i: (0, 0)),
            pl.BlockSpec((1, rdim), lambda bb, i: (0, 0)),
            pl.BlockSpec((rdim, c), lambda bb, i: (0, 0)),
            pl.BlockSpec((1, c), lambda bb, i: (0, 0)),
        ],
        out_specs=(
            pl.BlockSpec((tr, c), lambda bb, i: (bb * n_tiles + i, 0)),
            pl.BlockSpec((1, c), lambda bb, i: (bb, 0)),
        ),
        scratch_shapes=[pltpu.VMEM((1, c), jnp.float32)],
        compiler_params=pltpu.CompilerParams(
            dimension_semantics=("parallel", "arbitrary")),
    )(patches, dw_w, dw_b.reshape(1, c),
      se_r_w, se_r_b.reshape(1, rdim), se_e_w, se_e_b.reshape(1, c))
    return d, gate


def pallas_proj_head_pool(d, gate, proj_w, proj_b, head_w, head_b):
    """Fused SE-gate * project-1x1 * conv_head-1x1(SiLU) * global-average-pool.
    d: (B, R, C) bf16, gate: (B, C) f32 -> features (B, N_head) f32."""
    b, r, c = d.shape
    np_ = proj_w.shape[1]
    nh = head_w.shape[1]
    tr = _row_tile(r)

    return pl.pallas_call(
        functools.partial(_proj_head_pool_kernel, inv_rows=1.0 / float(r)),
        out_shape=jax.ShapeDtypeStruct((b, nh), jnp.float32),
        grid=(b, r // tr),
        in_specs=[
            pl.BlockSpec((1, tr, c), lambda bb, i: (bb, i, 0)),
            pl.BlockSpec((1, c), lambda bb, i: (bb, 0)),
            _const_spec((c, np_)),
            pl.BlockSpec((1, np_), lambda bb, i: (0, 0)),
            _const_spec((np_, nh)),
            pl.BlockSpec((1, nh), lambda bb, i: (0, 0)),
        ],
        out_specs=pl.BlockSpec((1, nh), lambda bb, i: (bb, 0)),
        scratch_shapes=[pltpu.VMEM((1, nh), jnp.float32)],
        compiler_params=pltpu.CompilerParams(
            dimension_semantics=("parallel", "arbitrary")),
    )(d, gate, proj_w, proj_b.reshape(1, np_), head_w, head_b.reshape(1, nh))


def pallas_heads(feat, p):
    """All three classification heads in one pallas_call, gridded ('parallel')
    over the 3 heads -> (B, 3*128) lane-dense logits slab."""
    b, f = feat.shape
    return pl.pallas_call(
        _heads_kernel,
        out_shape=jax.ShapeDtypeStruct((b, 3 * 128), jnp.float32),
        grid=(3,),
        in_specs=[
            pl.BlockSpec((b, f), lambda h: (0, 0)),
            pl.BlockSpec((1, f, 512), lambda h: (h, 0, 0)),
            pl.BlockSpec((1, 1, 512), lambda h: (h, 0, 0)),
            pl.BlockSpec((1, 512, 256), lambda h: (h, 0, 0)),
            pl.BlockSpec((1, 1, 256), lambda h: (h, 0, 0)),
            pl.BlockSpec((1, 256, 128), lambda h: (h, 0, 0)),
            pl.BlockSpec((1, 1, 128), lambda h: (h, 0, 0)),
        ],
        out_specs=pl.BlockSpec((b, 128), lambda h: (0, h)),
        compiler_params=pltpu.CompilerParams(dimension_semantics=("parallel",)),
    )(feat, p["heads_w1"], p["heads_b1"], p["heads_w2"], p["heads_b2"],
      p["heads_w3"], p["heads_b3"])


# --------------------------------------------------------------------------
# Glue: patch extraction (im2col) for convolutions
# --------------------------------------------------------------------------
# TODO(synk): at real EfficientNet-B4 resolutions the depthwise im2col should be
# replaced by an in-kernel halo/shifted-read scheme to avoid the 9x HBM blowup.

def extract_patches(x, kh, kw, stride, pad, tap_leading=False):
    """x: (B,H,W,C) -> (B,Ho,Wo,kh*kw,C) or tap-leading (kh*kw,B,Ho,Wo,C)."""
    b, h, w, c = x.shape
    xp = jnp.pad(x, ((0, 0), (pad, pad), (pad, pad), (0, 0)))
    ho = (h + 2 * pad - kh) // stride + 1
    wo = (w + 2 * pad - kw) // stride + 1
    cols = []
    for i in range(kh):
        for j in range(kw):
            cols.append(xp[:, i:i + ho * stride:stride, j:j + wo * stride:stride, :])
    if tap_leading:
        return jnp.stack(cols, axis=0)
    return jnp.stack(cols, axis=3)


# --------------------------------------------------------------------------
# Parameters (deterministic synthetic init; eval-mode BN pre-folded)
# --------------------------------------------------------------------------

def _w(key, shape, fan_in):
    return jax.random.normal(key, shape, jnp.float32) / jnp.sqrt(jnp.float32(fan_in))


def make_params(key):
    # NOTE: real BatchNorm running stats (mean/var/gamma/beta/eps) would be
    # folded into these weights / biases at parameter-prep time; here BN is
    # eval-mode identity so the fold is trivial.
    ks = iter(jax.random.split(key, 64))
    bf = jnp.bfloat16
    p = {}
    # backbone
    p["stem_w"] = _w(next(ks), (27, 48), 27).astype(bf)        # conv_stem 3x3, 3->48
    p["stem_b"] = jnp.zeros((48,), jnp.float32)
    p["exp_w"] = _w(next(ks), (48, 192), 48).astype(bf)        # MBConv expand 1x1
    p["exp_b"] = jnp.zeros((192,), jnp.float32)
    p["dw_w"] = _w(next(ks), (9, 1, 192), 9)                   # depthwise 3x3 (f32, VPU)
    p["dw_b"] = jnp.zeros((192,), jnp.float32)
    # squeeze-excite: reduce dim 12, padded to lane-dense 128 with zeros
    se_r = _w(next(ks), (192, 12), 192)
    se_rb = 0.01 * jax.random.normal(next(ks), (12,), jnp.float32)
    se_e = _w(next(ks), (12, 192), 12)
    p["se_r_w"] = jnp.zeros((192, 128), jnp.float32).at[:, :12].set(se_r).astype(bf)
    p["se_r_b"] = jnp.zeros((128,), jnp.float32).at[:12].set(se_rb)
    p["se_e_w"] = jnp.zeros((128, 192), jnp.float32).at[:12, :].set(se_e).astype(bf)
    p["se_e_b"] = 0.01 * jax.random.normal(next(ks), (192,), jnp.float32)
    p["proj_w"] = _w(next(ks), (192, 448), 192).astype(bf)     # MBConv project 1x1
    p["proj_b"] = jnp.zeros((448,), jnp.float32)
    p["head_w"] = _w(next(ks), (448, 1792), 448).astype(bf)    # conv_head 1x1 -> 1792
    p["head_b"] = jnp.zeros((1792,), jnp.float32)

    # classification heads: age(3), mask(3), gender(2)
    w1s, b1s, w2s, b2s, w3s, b3s = [], [], [], [], [], []
    for nout in (3, 3, 2):
        w1s.append(_w(next(ks), (1792, 512), 1792))
        b1s.append(0.01 * jax.random.normal(next(ks), (512,), jnp.float32))
        w2s.append(_w(next(ks), (512, 256), 512))
        b2s.append(0.01 * jax.random.normal(next(ks), (256,), jnp.float32))
        w3 = jnp.zeros((256, 128), jnp.float32).at[:, :nout].set(
            _w(next(ks), (256, nout), 256))
        b3 = jnp.zeros((128,), jnp.float32).at[:nout].set(
            0.01 * jax.random.normal(next(ks), (nout,), jnp.float32))
        w3s.append(w3)
        b3s.append(b3)
    p["heads_w1"] = jnp.stack(w1s, axis=0).astype(bf)                # (3, 1792, 512)
    p["heads_b1"] = jnp.stack(b1s, axis=0).reshape(3, 1, 512)
    p["heads_w2"] = jnp.stack(w2s, axis=0).astype(bf)                # (3, 512, 256)
    p["heads_b2"] = jnp.stack(b2s, axis=0).reshape(3, 1, 256)
    p["heads_w3"] = jnp.stack(w3s, axis=0).astype(bf)                # (3, 256, 128)
    p["heads_b3"] = jnp.stack(b3s, axis=0).reshape(3, 1, 128)
    return p


# --------------------------------------------------------------------------
# Forward pass
# --------------------------------------------------------------------------

def forward(params, x_nchw):
    # NCHW (PyTorch) -> NHWC (kernel layout); bf16 once at the boundary.
    x = jnp.transpose(x_nchw, (0, 2, 3, 1)).astype(jnp.bfloat16)
    b = x.shape[0]

    # conv_stem (3x3 s2 + BN + SiLU) fused with MBConv expand (1x1 + BN + SiLU)
    pat = extract_patches(x, 3, 3, 2, 1)                          # (B,Ho,Wo,9,3) bf16
    ho, wo = pat.shape[1], pat.shape[2]
    e = pallas_stem_expand(pat.reshape(b * ho * wo, 27),
                           params["stem_w"], params["stem_b"],
                           params["exp_w"], params["exp_b"])
    e = e.reshape(b, ho, wo, 192)                                 # bf16 intermediate

    # depthwise 3x3 s2 + BN + SiLU fused with global-average-pool + SE MLP
    # (the pooled (B,192) and the SE gate never require a re-read of d).
    patd = extract_patches(e, 3, 3, 2, 1, tap_leading=True)       # (9,B,Ho2,Wo2,192) bf16
    ho2, wo2 = patd.shape[2], patd.shape[3]
    r = ho2 * wo2
    d_flat, gate = pallas_dwconv_pool_se(
        patd.reshape(9, b * r, 192), params["dw_w"], params["dw_b"],
        params["se_r_w"], params["se_r_b"], params["se_e_w"], params["se_e_b"],
        b, r)
    d = d_flat.reshape(b, r, 192)                                 # bf16 intermediate

    # fused: SE gating -> project 1x1 (BN) -> conv_head 1x1 (BN+SiLU)
    #        -> global average pool  ==> features (B, 1792)
    feat = pallas_proj_head_pool(d, gate,
                                 params["proj_w"], params["proj_b"],
                                 params["head_w"], params["head_b"])

    # all three heads in one kernel (grid over heads); lane-dense logits slab
    logits = pallas_heads(feat, params)
    age = logits[:, 0:3]
    mask = logits[:, 128:131]
    gender = logits[:, 256:258]
    return age, mask, gender


# --------------------------------------------------------------------------

if __name__ == "__main__":
    key = jax.random.PRNGKey(0)
    pkey, xkey = jax.random.split(key)
    params = make_params(pkey)

    # small NCHW input (PyTorch convention), 3 channels as the model expects
    x = jax.random.normal(xkey, (2, 3, 32, 32), jnp.float32)

    age, mask, gender = jax.block_until_ready(forward(params, x))
    assert age.shape == (2, 3), age.shape
    assert mask.shape == (2, 3), mask.shape
    assert gender.shape == (2, 2), gender.shape
    assert (jnp.all(jnp.isfinite(age)) and jnp.all(jnp.isfinite(mask))
            and jnp.all(jnp.isfinite(gender)))
    print("KERNEL_OK")
</pallas_src>

<mosaic_0001>
module attributes {stable_mosaic.version = 11 : i64} {
  func.func @_stem_expand_kernel(%arg0: i32, %arg1: memref<512x27xbf16, #tpu.memory_space<vmem>>, %arg2: memref<27x48xbf16, #tpu.memory_space<vmem>>, %arg3: memref<1x48xf32, #tpu.memory_space<vmem>>, %arg4: memref<48x192xbf16, #tpu.memory_space<vmem>>, %arg5: memref<1x192xf32, #tpu.memory_space<vmem>>, %arg6: memref<512x192xbf16, #tpu.memory_space<vmem>>) attributes {dimension_semantics = [#tpu.dimension_semantics<parallel>], iteration_bounds = array<i64: 1>, scalar_prefetch = 0 : i64, scratch_operands = 0 : i64, tpu.core_type = #tpu.core_type<tc>, window_params = [{transform_indices = @transform_0, window_bounds = array<i64: 512, 27>}, {pipeline_mode = #tpu.pipeline_mode<synchronous>, transform_indices = @transform_1, window_bounds = array<i64: 27, 48>}, {pipeline_mode = #tpu.pipeline_mode<synchronous>, transform_indices = @transform_2, window_bounds = array<i64: 1, 48>}, {pipeline_mode = #tpu.pipeline_mode<synchronous>, transform_indices = @transform_3, window_bounds = array<i64: 48, 192>}, {pipeline_mode = #tpu.pipeline_mode<synchronous>, transform_indices = @transform_4, window_bounds = array<i64: 1, 192>}, {transform_indices = @transform_5, window_bounds = array<i64: 512, 192>}]} {
    %c0 = arith.constant 0 : index
    %c0_0 = arith.constant 0 : index
    %0 = vector.load %arg1[%c0, %c0_0] : memref<512x27xbf16, #tpu.memory_space<vmem>>, vector<512x27xbf16>
    %c0_1 = arith.constant 0 : index
    %c0_2 = arith.constant 0 : index
    %1 = vector.load %arg2[%c0_1, %c0_2] : memref<27x48xbf16, #tpu.memory_space<vmem>>, vector<27x48xbf16>
    %cst = arith.constant dense<0.000000e+00> : vector<512x48xf32>
    %2 = tpu.matmul %0, %1, %cst {dimension_numbers = #tpu.dot_dimension_numbers<[1], [0], [0], [1], [0, 0, 1, 1], [], []>} : vector<512x27xbf16>, vector<27x48xbf16>, vector<512x48xf32> -> vector<512x48xf32>
    %c0_3 = arith.constant 0 : index
    %c0_4 = arith.constant 0 : index
    %3 = vector.load %arg3[%c0_3, %c0_4] : memref<1x48xf32, #tpu.memory_space<vmem>>, vector<1x48xf32>
    %4 = vector.broadcast %3 : vector<1x48xf32> to vector<512x48xf32>
    %5 = arith.addf %2, %4 : vector<512x48xf32>
    %6 = arith.negf %5 : vector<512x48xf32>
    %7 = math.exp %6 : vector<512x48xf32>
    %cst_5 = arith.constant 1.000000e+00 : f32
    %8 = vector.broadcast %cst_5 : f32 to vector<512x48xf32>
    %9 = arith.addf %8, %7 : vector<512x48xf32>
    %10 = arith.divf %8, %9 : vector<512x48xf32>
    %11 = arith.mulf %5, %10 : vector<512x48xf32>
    %12 = arith.truncf %11 : vector<512x48xf32> to vector<512x48xbf16>
    %c0_6 = arith.constant 0 : index
    %c0_7 = arith.constant 0 : index
    %13 = vector.load %arg4[%c0_6, %c0_7] : memref<48x192xbf16, #tpu.memory_space<vmem>>, vector<48x192xbf16>
    %cst_8 = arith.constant dense<0.000000e+00> : vector<512x192xf32>
    %14 = tpu.matmul %12, %13, %cst_8 {dimension_numbers = #tpu.dot_dimension_numbers<[1], [0], [0], [1], [0, 0, 1, 1], [], []>} : vector<512x48xbf16>, vector<48x192xbf16>, vector<512x192xf32> -> vector<512x192xf32>
    %c0_9 = arith.constant 0 : index
    %c0_10 = arith.constant 0 : index
    %15 = vector.load %arg5[%c0_9, %c0_10] : memref<1x192xf32, #tpu.memory_space<vmem>>, vector<1x192xf32>
    %16 = vector.broadcast %15 : vector<1x192xf32> to vector<512x192xf32>
    %17 = arith.addf %14, %16 : vector<512x192xf32>
    %18 = arith.negf %17 : vector<512x192xf32>
    %19 = math.exp %18 : vector<512x192xf32>
    %cst_11 = arith.constant 1.000000e+00 : f32
    %20 = vector.broadcast %cst_11 : f32 to vector<512x192xf32>
    %21 = arith.addf %20, %19 : vector<512x192xf32>
    %22 = arith.divf %20, %21 : vector<512x192xf32>
    %23 = arith.mulf %17, %22 : vector<512x192xf32>
    %24 = arith.truncf %23 : vector<512x192xf32> to vector<512x192xbf16>
    %c0_12 = arith.constant 0 : index
    %c0_13 = arith.constant 0 : index
    %25 = vector.load %arg6[%c0_12, %c0_13] : memref<512x192xbf16, #tpu.memory_space<vmem>>, vector<512x192xbf16>
    tpu.vector_store %arg6[%c0_12, %c0_13], %24 {strides = array<i32>} : memref<512x192xbf16, #tpu.memory_space<vmem>>, vector<512x192xbf16>,
    return
  }
  func.func @transform_0(%arg0: i32) -> (i32, i32) {
    %c0_i32 = arith.constant 0 : i32
    %c0_i32_0 = arith.constant 0 : i32
    return %arg0, %c0_i32 : i32, i32
  }
  func.func @transform_1(%arg0: i32) -> (i32, i32) {
    %c0_i32 = arith.constant 0 : i32
    %c0_i32_0 = arith.constant 0 : i32
    %c0_i32_1 = arith.constant 0 : i32
    return %c0_i32, %c0_i32_0 : i32, i32
  }
  func.func @transform_2(%arg0: i32) -> (i32, i32) {
    %c0_i32 = arith.constant 0 : i32
    %c0_i32_0 = arith.constant 0 : i32
    %c0_i32_1 = arith.constant 0 : i32
    return %c0_i32, %c0_i32_0 : i32, i32
  }
  func.func @transform_3(%arg0: i32) -> (i32, i32) {
    %c0_i32 = arith.constant 0 : i32
    %c0_i32_0 = arith.constant 0 : i32
    %c0_i32_1 = arith.constant 0 : i32
    return %c0_i32, %c0_i32_0 : i32, i32
  }
  func.func @transform_4(%arg0: i32) -> (i32, i32) {
    %c0_i32 = arith.constant 0 : i32
    %c0_i32_0 = arith.constant 0 : i32
    %c0_i32_1 = arith.constant 0 : i32
    return %c0_i32, %c0_i32_0 : i32, i32
  }
  func.func @transform_5(%arg0: i32) -> (i32, i32) {
    %c0_i32 = arith.constant 0 : i32
    %c0_i32_0 = arith.constant 0 : i32
    return %arg0, %c0_i32 : i32, i32
  }
}

</mosaic_0001>

<llo_original>
// kernel: tpu_custom_call.1
$region0: #{tpu_custom_call.1}
  #allocation0 [shape = 'u32[]', space=smem, size = 0x4, offset = 0x4, fixed_abs, tag = 'smem constant byte address 0x4 - core index']
  #allocation1 [shape = 'u32[144,128]{1,0:T(1,128)}', space=vmem, size = 0x12000, scoped, tag = 'internal scratch']
  %s0 = inlined_call_operand.vmem [shape: bf16[512,27], index: 0, kind: input, shape index: {}]
  %s1 = inlined_call_operand.vmem [shape: bf16[27,48], index: 1, kind: input, shape index: {}]
  %s2 = inlined_call_operand.vmem [shape: f32[1,48], index: 2, kind: input, shape index: {}]
  %s3 = inlined_call_operand.vmem [shape: bf16[48,192], index: 3, kind: input, shape index: {}]
  %s4 = inlined_call_operand.vmem [shape: f32[1,192], index: 4, kind: input, shape index: {}]
  %s5 = inlined_call_operand.vmem [shape: bf16[512,192], index: 5, kind: output, shape index: {}]
  %s6 = sld [smem:[#allocation0]]
  $region30: #{tpu_custom_call.1} parent=0
    _
  %s8 = ssub.s32 1, %s6
  %s9 = scalar_select 0, %s8, %s6
  // Predicated region
  $region2: #{tpu_custom_call.1} parent=0 // pred_check
    _
  $region3: #{tpu_custom_call.1} parent=0 // pred_check_branch
    %11 = sbr.rel (0) target = $region5
  $region4: #{tpu_custom_call.1} parent=0 // pred_region
    _
  $region5: #{tpu_custom_call.1} parent=0 // pred_fallthru
    _
  // Predicated region
  $region6: #{tpu_custom_call.1} parent=0 // pred_check
    _
  $region7: #{tpu_custom_call.1} parent=0 // pred_check_branch
    %13 = sbr.rel (0) target = $region9
  $region8: #{tpu_custom_call.1} parent=0 // pred_region
    _
  $region9: #{tpu_custom_call.1} parent=0 // pred_fallthru
    _
  // Predicated region
  $region10: #{tpu_custom_call.1} parent=0 // pred_check
    _
  $region11: #{tpu_custom_call.1} parent=0 // pred_check_branch
    %15 = sbr.rel (0) target = $region13
  $region12: #{tpu_custom_call.1} parent=0 // pred_region
    _
  $region13: #{tpu_custom_call.1} parent=0 // pred_fallthru
    _
  // Predicated region
  $region14: #{tpu_custom_call.1} parent=0 // pred_check
    _
  $region15: #{tpu_custom_call.1} parent=0 // pred_check_branch
    %17 = sbr.rel (0) target = $region17
  $region16: #{tpu_custom_call.1} parent=0 // pred_region
    _
  $region17: #{tpu_custom_call.1} parent=0 // pred_fallthru
    _
  // Predicated region
  $region18: #{tpu_custom_call.1} parent=0 // pred_check
    _
  $region19: #{tpu_custom_call.1} parent=0 // pred_check_branch
    %19 = sbr.rel (0) target = $region21
  $region20: #{tpu_custom_call.1} parent=0 // pred_region
    _
  $region21: #{tpu_custom_call.1} parent=0 // pred_fallthru
    _
  %v21 = vld [vmem:[%s0] sm:$0xf]
  %v22 = vld [vmem:[%s0 + $0x4] sm:$0xf]
  %v23 = vld [vmem:[%s0 + $0x8] sm:$0xf]
  %v24 = vld [vmem:[%s0 + $0xc] sm:$0xf]
  %v25 = vld [vmem:[%s0 + $0x10] sm:$0xf]
  %v26 = vld [vmem:[%s0 + $0x14] sm:$0xf]
  %v27 = vld [vmem:[%s0 + $0x18] sm:$0xf]
  %v28 = vld [vmem:[%s0 + $0x1c] sm:$0xf]
  %v29 = vld [vmem:[%s0 + $0x20] sm:$0xf]
  %v30 = vld [vmem:[%s0 + $0x24] sm:$0xf]
  %v31 = vld [vmem:[%s0 + $0x28] sm:$0xf]
  %v32 = vld [vmem:[%s0 + $0x2c] sm:$0xf]
  %v33 = vld [vmem:[%s0 + $0x30] sm:$0xf]
  %v34 = vld [vmem:[%s0 + $0x34] sm:$0xf]
  %v35 = vld [vmem:[%s0 + $0x38] sm:$0xf]
  %v36 = vld [vmem:[%s0 + $0x3c] sm:$0xf]
  %v37 = vld [vmem:[%s0 + $0x40] sm:$0xf]
  %v38 = vld [vmem:[%s0 + $0x44] sm:$0xf]
  %v39 = vld [vmem:[%s0 + $0x48] sm:$0xf]
  %v40 = vld [vmem:[%s0 + $0x4c] sm:$0xf]
  %v41 = vld [vmem:[%s0 + $0x50] sm:$0xf]
  %v42 = vld [vmem:[%s0 + $0x54] sm:$0xf]
  %v43 = vld [vmem:[%s0 + $0x58] sm:$0xf]
  %v44 = vld [vmem:[%s0 + $0x5c] sm:$0xf]
  %v45 = vld [vmem:[%s0 + $0x60] sm:$0xf]
  %v46 = vld [vmem:[%s0 + $0x64] sm:$0xf]
  %v47 = vld [vmem:[%s0 + $0x68] sm:$0xf]
  %v48 = vld [vmem:[%s0 + $0x6c] sm:$0xf]
  %v49 = vld [vmem:[%s0 + $0x70] sm:$0xf]
  %v50 = vld [vmem:[%s0 + $0x74] sm:$0xf]
  %v51 = vld [vmem:[%s0 + $0x78] sm:$0xf]
  %v52 = vld [vmem:[%s0 + $0x7c] sm:$0xf]
  %v53 = vld [vmem:[%s0 + $0x80] sm:$0xf]
  %v54 = vld [vmem:[%s0 + $0x84] sm:$0xf]
  %v55 = vld [vmem:[%s0 + $0x88] sm:$0xf]
  %v56 = vld [vmem:[%s0 + $0x8c] sm:$0xf]
  %v57 = vld [vmem:[%s0 + $0x90] sm:$0xf]
  %v58 = vld [vmem:[%s0 + $0x94] sm:$0xf]
  %v59 = vld [vmem:[%s0 + $0x98] sm:$0xf]
  %v60 = vld [vmem:[%s0 + $0x9c] sm:$0xf]
  %v61 = vld [vmem:[%s0 + $0xa0] sm:$0xf]
  %v62 = vld [vmem:[%s0 + $0xa4] sm:$0xf]
  %v63 = vld [vmem:[%s0 + $0xa8] sm:$0xf]
  %v64 = vld [vmem:[%s0 + $0xac] sm:$0xf]
  %v65 = vld [vmem:[%s0 + $0xb0] sm:$0xf]
  %v66 = vld [vmem:[%s0 + $0xb4] sm:$0xf]
  %v67 = vld [vmem:[%s0 + $0xb8] sm:$0xf]
  %v68 = vld [vmem:[%s0 + $0xbc] sm:$0xf]
  %v69 = vld [vmem:[%s0 + $0xc0] sm:$0xf]
  %v70 = vld [vmem:[%s0 + $0xc4] sm:$0xf]
  %v71 = vld [vmem:[%s0 + $0xc8] sm:$0xf]
  %v72 = vld [vmem:[%s0 + $0xcc] sm:$0xf]
  %v73 = vld [vmem:[%s0 + $0xd0] sm:$0xf]
  %v74 = vld [vmem:[%s0 + $0xd4] sm:$0xf]
  %v75 = vld [vmem:[%s0 + $0xd8] sm:$0xf]
  %v76 = vld [vmem:[%s0 + $0xdc] sm:$0xf]
  %v77 = vld [vmem:[%s0 + $0xe0] sm:$0xf]
  %v78 = vld [vmem:[%s0 + $0xe4] sm:$0xf]
  %v79 = vld [vmem:[%s0 + $0xe8] sm:$0xf]
  %v80 = vld [vmem:[%s0 + $0xec] sm:$0xf]
  %v81 = vld [vmem:[%s0 + $0xf0] sm:$0xf]
  %v82 = vld [vmem:[%s0 + $0xf4] sm:$0xf]
  %v83 = vld [vmem:[%s0 + $0xf8] sm:$0xf]
  %v84 = vld [vmem:[%s0 + $0xfc] sm:$0xf]
  %v85 = vld [vmem:[%s1] sm:$0xf]
  %v86 = vld [vmem:[%s1 + $0x4] sm:$0xf]
  %v87 = vld [vmem:[%s1 + $0x8] sm:$0xf]
  %v88 = vld [vmem:[%s1 + $0xc] sm:$0x3]
  %v89 = vld [vmem:[%s2] sm:$0x1]
  %v91 = vlaneseq
  %v92 = vshrl.u32 %v91, 7
  %v93 = vsub.s32 0, %v92
  %v94 = vrot.slane %v89, %v93
  %v160 = vunpack.c.l.b16 %v21
  %v161 = vunpack.c.l.b16 %v22
  %v162 = vunpack.c.l.b16 %v23
  %v163 = vunpack.c.l.b16 %v24
  %v164 = vunpack.c.l.b16 %v25
  %v165 = vunpack.c.l.b16 %v26
  %v166 = vunpack.c.l.b16 %v27
  %v167 = vunpack.c.l.b16 %v28
  %v168 = vunpack.c.l.b16 %v29
  %v169 = vunpack.c.l.b16 %v30
  %v170 = vunpack.c.l.b16 %v31
  %v171 = vunpack.c.l.b16 %v32
  %v172 = vunpack.c.l.b16 %v33
  %v173 = vunpack.c.l.b16 %v34
  %v174 = vunpack.c.l.b16 %v35
  %v175 = vunpack.c.l.b16 %v36
  %v176 = vunpack.c.l.b16 %v37
  %v177 = vunpack.c.l.b16 %v38
  %v178 = vunpack.c.l.b16 %v39
  %v179 = vunpack.c.l.b16 %v40
  %v180 = vunpack.c.l.b16 %v41
  %v181 = vunpack.c.l.b16 %v42
  %v182 = vunpack.c.l.b16 %v43
  %v183 = vunpack.c.l.b16 %v44
  %v184 = vunpack.c.l.b16 %v45
  %v185 = vunpack.c.l.b16 %v46
  %v186 = vunpack.c.l.b16 %v47
  %v187 = vunpack.c.l.b16 %v48
  %v188 = vunpack.c.l.b16 %v49
  %v189 = vunpack.c.l.b16 %v50
  %v190 = vunpack.c.l.b16 %v51
  %v191 = vunpack.c.l.b16 %v52
  %v192 = vunpack.c.l.b16 %v53
  %v193 = vunpack.c.l.b16 %v54
  %v194 = vunpack.c.l.b16 %v55
  %v195 = vunpack.c.l.b16 %v56
  %v196 = vunpack.c.l.b16 %v57
  %v197 = vunpack.c.l.b16 %v58
  %v198 = vunpack.c.l.b16 %v59
  %v199 = vunpack.c.l.b16 %v60
  %v200 = vunpack.c.l.b16 %v61
  %v201 = vunpack.c.l.b16 %v62
  %v202 = vunpack.c.l.b16 %v63
  %v203 = vunpack.c.l.b16 %v64
  %v204 = vunpack.c.l.b16 %v65
  %v205 = vunpack.c.l.b16 %v66
  %v206 = vunpack.c.l.b16 %v67
  %v207 = vunpack.c.l.b16 %v68
  %v208 = vunpack.c.l.b16 %v69
  %v209 = vunpack.c.l.b16 %v70
  %v210 = vunpack.c.l.b16 %v71
  %v211 = vunpack.c.l.b16 %v72
  %v212 = vunpack.c.l.b16 %v73
  %v213 = vunpack.c.l.b16 %v74
  %v214 = vunpack.c.l.b16 %v75
  %v215 = vunpack.c.l.b16 %v76
  %v216 = vunpack.c.l.b16 %v77
  %v217 = vunpack.c.l.b16 %v78
  %v218 = vunpack.c.l.b16 %v79
  %v219 = vunpack.c.l.b16 %v80
  %v220 = vunpack.c.l.b16 %v81
  %v221 = vunpack.c.l.b16 %v82
  %v222 = vunpack.c.l.b16 %v83
  %v223 = vunpack.c.l.b16 %v84
  %v224 = vpack.c.b16 %v161, %v160
  %v225 = vpack.c.b16 %v163, %v162
  %v226 = vpack.c.b16 %v165, %v164
  %v227 = vpack.c.b16 %v167, %v166
  %v228 = vpack.c.b16 %v169, %v168
  %v229 = vpack.c.b16 %v171, %v170
  %v230 = vpack.c.b16 %v173, %v172
  %v231 = vpack.c.b16 %v175, %v174
  %v232 = vpack.c.b16 %v177, %v176
  %v233 = vpack.c.b16 %v179, %v178
  %v234 = vpack.c.b16 %v181, %v180
  %v235 = vpack.c.b16 %v183, %v182
  %v236 = vpack.c.b16 %v185, %v184
  %v237 = vpack.c.b16 %v187, %v186
  %v238 = vpack.c.b16 %v189, %v188
  %v239 = vpack.c.b16 %v191, %v190
  %v240 = vpack.c.b16 %v193, %v192
  %v241 = vpack.c.b16 %v195, %v194
  %v242 = vpack.c.b16 %v197, %v196
  %v243 = vpack.c.b16 %v199, %v198
  %v244 = vpack.c.b16 %v201, %v200
  %v245 = vpack.c.b16 %v203, %v202
  %v246 = vpack.c.b16 %v205, %v204
  %v247 = vpack.c.b16 %v207, %v206
  %v248 = vpack.c.b16 %v209, %v208
  %v249 = vpack.c.b16 %v211, %v210
  %v250 = vpack.c.b16 %v213, %v212
  %v251 = vpack.c.b16 %v215, %v214
  %v252 = vpack.c.b16 %v217, %v216
  %v253 = vpack.c.b16 %v219, %v218
  %v254 = vpack.c.b16 %v221, %v220
  %v255 = vpack.c.b16 %v223, %v222
  %v260 = vunpack.c.l.b16 %v85
  %v261 = vunpack.c.l.b16 %v86
  %v262 = vunpack.c.l.b16 %v87
  %v263 = vunpack.c.l.b16 %v88
  %v264 = vpack.c.b16 %v261, %v260
  %v265 = vpack.c.b16 %v263, %v262
  %vm267 = vcmask 220160
  %v269 = vsel %vm267, %v224, 0
  %v272 = vsel %vm267, %v225, 0
  %v275 = vsel %vm267, %v226, 0
  %v278 = vsel %vm267, %v227, 0
  %v281 = vsel %vm267, %v228, 0
  %v284 = vsel %vm267, %v229, 0
  %v287 = vsel %vm267, %v230, 0
  %v290 = vsel %vm267, %v231, 0
  %v293 = vsel %vm267, %v232, 0
  %v296 = vsel %vm267, %v233, 0
  %v299 = vsel %vm267, %v234, 0
  %v302 = vsel %vm267, %v235, 0
  %v305 = vsel %vm267, %v236, 0
  %v308 = vsel %vm267, %v237, 0
  %v311 = vsel %vm267, %v238, 0
  %v314 = vsel %vm267, %v239, 0
  %v317 = vsel %vm267, %v240, 0
  %v320 = vsel %vm267, %v241, 0
  %v323 = vsel %vm267, %v242, 0
  %v326 = vsel %vm267, %v243, 0
  %v329 = vsel %vm267, %v244, 0
  %v332 = vsel %vm267, %v245, 0
  %v335 = vsel %vm267, %v246, 0
  %v338 = vsel %vm267, %v247, 0
  %v341 = vsel %vm267, %v248, 0
  %v344 = vsel %vm267, %v249, 0
  %v347 = vsel %vm267, %v250, 0
  %v350 = vsel %vm267, %v251, 0
  %v353 = vsel %vm267, %v252, 0
  %v356 = vsel %vm267, %v253, 0
  %v359 = vsel %vm267, %v254, 0
  %v362 = vsel %vm267, %v255, 0
  %vm364 = vcmask 1044480
  %vm365 = vcmask 1045504
  %v366 = vsel %vm364, 4294967295, 65535
  %v367 = vsel %vm365, %v366, 0
  %v369 = vand.u32 %v265, %v367
  %371 = vmatprep.subr.bf16.mxu0 0
  %372 = vmatpush1.bf16.msra.mxu0 0
  %373 = vmatprep.subr.bf16.mxu0 0
  %374 = vmatpush1.bf16.msra.mxu0 0
  %375 = vmatprep.subr.bf16.mxu0 0
  %376 = vmatpush1.bf16.msra.mxu0 0
  %377 = vmatprep.subr.bf16.mxu0 0
  %378 = vmatpush1.bf16.msra.mxu0 0
  %379 = vmatprep.subr.bf16.mxu0 0
  %380 = vmatpush1.bf16.msra.mxu0 0
  %381 = vmatprep.subr.bf16.mxu0 0
  %382 = vmatpush1.bf16.msra.mxu0 0
  %383 = vmatprep.subr.bf16.mxu0 0
  %384 = vmatpush1.bf16.msra.mxu0 %v369
  %385 = vmatprep.subr.bf16.mxu0 0
  %386 = vmatpush1.bf16.msra.mxu0 %v264
  %387 = vmatprep.subr.bf16.mxu0 0
  %388 = vmatpush2.bf16.msra.mxu0 0
  %389 = vmatprep.subr.bf16.mxu0 0
  %390 = vmatpush2.bf16.msra.mxu0 0
  %391 = vmatprep.subr.bf16.mxu0 0
  %392 = vmatpush2.bf16.msra.mxu0 0
  %393 = vmatprep.subr.bf16.mxu0 0
  %394 = vmatpush2.bf16.msra.mxu0 0
  %395 = vmatprep.subr.bf16.mxu0 0
  %396 = vmatpush2.bf16.msra.mxu0 0
  %397 = vmatprep.subr.bf16.mxu0 0
  %398 = vmatpush2.bf16.msra.mxu0 0
  %399 = vmatprep.subr.bf16.mxu0 0
  %400 = vmatpush2.bf16.msra.mxu0 0
  %401 = vmatprep.subr.bf16.mxu0 0
  %402 = vmatpush2.bf16.msra.mxu0 0
  %403 = vmatprep.mubr.bf16.mxu0 0
  %404 = vmatmul.mubr.bf16.gmra.mxu0 %v269
  %v405 = vpop.f32.mrf.mxu0
  %v406 = vadd.f32 %v94, %v405
  %v407 = vpop.f32.mrf.mxu0
  %v408 = vpop.f32.mrf.mxu0
  %v409 = vadd.f32 %v94, %v408
  %v410 = vpop.f32.mrf.mxu0
  %411 = vmatprep.mubr.bf16.mxu0 0
  %412 = vmatmul.mubr.bf16.gmra.mxu0 %v272
  %v413 = vpop.f32.mrf.mxu0
  %v414 = vadd.f32 %v94, %v413
  %v415 = vpop.f32.mrf.mxu0
  %v416 = vpop.f32.mrf.mxu0
  %v417 = vadd.f32 %v94, %v416
  %v418 = vpop.f32.mrf.mxu0
  %419 = vmatprep.mubr.bf16.mxu0 0
  %420 = vmatmul.mubr.bf16.gmra.mxu0 %v275
  %v421 = vpop.f32.mrf.mxu0
  %v422 = vadd.f32 %v94, %v421
  %v423 = vpop.f32.mrf.mxu0
  %v424 = vpop.f32.mrf.mxu0
  %v425 = vadd.f32 %v94, %v424
  %v426 = vpop.f32.mrf.mxu0
  %427 = vmatprep.mubr.bf16.mxu0 0
  %428 = vmatmul.mubr.bf16.gmra.mxu0 %v278
  %v429 = vpop.f32.mrf.mxu0
  %v430 = vadd.f32 %v94, %v429
  %v431 = vpop.f32.mrf.mxu0
  %v432 = vpop.f32.mrf.mxu0
  %v433 = vadd.f32 %v94, %v432
  %v434 = vpop.f32.mrf.mxu0
  %435 = vmatprep.mubr.bf16.mxu0 0
  %436 = vmatmul.mubr.bf16.gmra.mxu0 %v281
  %v437 = vpop.f32.mrf.mxu0
  %v438 = vadd.f32 %v94, %v437
  %v439 = vpop.f32.mrf.mxu0
  %v440 = vpop.f32.mrf.mxu0
  %v441 = vadd.f32 %v94, %v440
  %v442 = vpop.f32.mrf.mxu0
  %443 = vmatprep.mubr.bf16.mxu0 0
  %444 = vmatmul.mubr.bf16.gmra.mxu0 %v284
  %v445 = vpop.f32.mrf.mxu0
  %v446 = vadd.f32 %v94, %v445
  %v447 = vpop.f32.mrf.mxu0
  %v448 = vpop.f32.mrf.mxu0
  %v449 = vadd.f32 %v94, %v448
  %v450 = vpop.f32.mrf.mxu0
  %451 = vmatprep.mubr.bf16.mxu0 0
  %452 = vmatmul.mubr.bf16.gmra.mxu0 %v287
  %v453 = vpop.f32.mrf.mxu0
  %v454 = vadd.f32 %v94, %v453
  %v455 = vpop.f32.mrf.mxu0
  %v456 = vpop.f32.mrf.mxu0
  %v457 = vadd.f32 %v94, %v456
  %v458 = vpop.f32.mrf.mxu0
  %459 = vmatprep.mubr.bf16.mxu0 0
  %460 = vmatmul.mubr.bf16.gmra.mxu0 %v290
  %v461 = vpop.f32.mrf.mxu0
  %v462 = vadd.f32 %v94, %v461
  %v463 = vpop.f32.mrf.mxu0
  %v464 = vpop.f32.mrf.mxu0
  %v465 = vadd.f32 %v94, %v464
  %v466 = vpop.f32.mrf.mxu0
  %467 = vmatprep.mubr.bf16.mxu0 0
  %468 = vmatmul.mubr.bf16.gmra.mxu0 %v293
  %v469 = vpop.f32.mrf.mxu0
  %v470 = vadd.f32 %v94, %v469
  %v471 = vpop.f32.mrf.mxu0
  %v472 = vpop.f32.mrf.mxu0
  %v473 = vadd.f32 %v94, %v472
  %v474 = vpop.f32.mrf.mxu0
  %475 = vmatprep.mubr.bf16.mxu0 0
  %476 = vmatmul.mubr.bf16.gmra.mxu0 %v296
  %v477 = vpop.f32.mrf.mxu0
  %v478 = vadd.f32 %v94, %v477
  %v479 = vpop.f32.mrf.mxu0
  %v480 = vpop.f32.mrf.mxu0
  %v481 = vadd.f32 %v94, %v480
  %v482 = vpop.f32.mrf.mxu0
  %483 = vmatprep.mubr.bf16.mxu0 0
  %484 = vmatmul.mubr.bf16.gmra.mxu0 %v299
  %v485 = vpop.f32.mrf.mxu0
  %v486 = vadd.f32 %v94, %v485
  %v487 = vpop.f32.mrf.mxu0
  %v488 = vpop.f32.mrf.mxu0
  %v489 = vadd.f32 %v94, %v488
  %v490 = vpop.f32.mrf.mxu0
  %491 = vmatprep.mubr.bf16.mxu0 0
  %492 = vmatmul.mubr.bf16.gmra.mxu0 %v302
  %v493 = vpop.f32.mrf.mxu0
  %v494 = vadd.f32 %v94, %v493
  %v495 = vpop.f32.mrf.mxu0
  %v496 = vpop.f32.mrf.mxu0
  %v497 = vadd.f32 %v94, %v496
  %v498 = vpop.f32.mrf.mxu0
  %499 = vmatprep.mubr.bf16.mxu0 0
  %500 = vmatmul.mubr.bf16.gmra.mxu0 %v305
  %v501 = vpop.f32.mrf.mxu0
  %v502 = vadd.f32 %v94, %v501
  %v503 = vpop.f32.mrf.mxu0
  %v504 = vpop.f32.mrf.mxu0
  %v505 = vadd.f32 %v94, %v504
  %v506 = vpop.f32.mrf.mxu0
  %507 = vmatprep.mubr.bf16.mxu0 0
  %508 = vmatmul.mubr.bf16.gmra.mxu0 %v308
  %v509 = vpop.f32.mrf.mxu0
  %v510 = vadd.f32 %v94, %v509
  %v511 = vpop.f32.mrf.mxu0
  %v512 = vpop.f32.mrf.mxu0
  %v513 = vadd.f32 %v94, %v512
  %v514 = vpop.f32.mrf.mxu0
  %515 = vmatprep.mubr.bf16.mxu0 0
  %516 = vmatmul.mubr.bf16.gmra.mxu0 %v311
  %v517 = vpop.f32.mrf.mxu0
  %v518 = vadd.f32 %v94, %v517
  %v519 = vpop.f32.mrf.mxu0
  %v520 = vpop.f32.mrf.mxu0
  %v521 = vadd.f32 %v94, %v520
  %v522 = vpop.f32.mrf.mxu0
  %523 = vmatprep.mubr.bf16.mxu0 0
  %524 = vmatmul.mubr.bf16.gmra.mxu0 %v314
  %v525 = vpop.f32.mrf.mxu0
  %v526 = vadd.f32 %v94, %v525
  %v527 = vpop.f32.mrf.mxu0
  %v528 = vpop.f32.mrf.mxu0
  %v529 = vadd.f32 %v94, %v528
  %v530 = vpop.f32.mrf.mxu0
  %531 = vmatprep.mubr.bf16.mxu0 0
  %532 = vmatmul.mubr.bf16.gmra.mxu0 %v317
  %v533 = vpop.f32.mrf.mxu0
  %v534 = vadd.f32 %v94, %v533
  %v535 = vpop.f32.mrf.mxu0
  %v536 = vpop.f32.mrf.mxu0
  %v537 = vadd.f32 %v94, %v536
  %v538 = vpop.f32.mrf.mxu0
  %539 = vmatprep.mubr.bf16.mxu0 0
  %540 = vmatmul.mubr.bf16.gmra.mxu0 %v320
  %v541 = vpop.f32.mrf.mxu0
  %v542 = vadd.f32 %v94, %v541
  %v543 = vpop.f32.mrf.mxu0
  %v544 = vpop.f32.mrf.mxu0
  %v545 = vadd.f32 %v94, %v544
  %v546 = vpop.f32.mrf.mxu0
  %547 = vmatprep.mubr.bf16.mxu0 0
  %548 = vmatmul.mubr.bf16.gmra.mxu0 %v323
  %v549 = vpop.f32.mrf.mxu0
  %v550 = vadd.f32 %v94, %v549
  %v551 = vpop.f32.mrf.mxu0
  %v552 = vpop.f32.mrf.mxu0
  %v553 = vadd.f32 %v94, %v552
  %v554 = vpop.f32.mrf.mxu0
  %555 = vmatprep.mubr.bf16.mxu0 0
  %556 = vmatmul.mubr.bf16.gmra.mxu0 %v326
  %v557 = vpop.f32.mrf.mxu0
  %v558 = vadd.f32 %v94, %v557
  %v559 = vpop.f32.mrf.mxu0
  %v560 = vpop.f32.mrf.mxu0
  %v561 = vadd.f32 %v94, %v560
  %v562 = vpop.f32.mrf.mxu0
  %563 = vmatprep.mubr.bf16.mxu0 0
  %564 = vmatmul.mubr.bf16.gmra.mxu0 %v329
  %v565 = vpop.f32.mrf.mxu0
  %v566 = vadd.f32 %v94, %v565
  %v567 = vpop.f32.mrf.mxu0
  %v568 = vpop.f32.mrf.mxu0
  %v569 = vadd.f32 %v94, %v568
  %v570 = vpop.f32.mrf.mxu0
  %571 = vmatprep.mubr.bf16.mxu0 0
  %572 = vmatmul.mubr.bf16.gmra.mxu0 %v332
  %v573 = vpop.f32.mrf.mxu0
  %v574 = vadd.f32 %v94, %v573
  %v575 = vpop.f32.mrf.mxu0
  %v576 = vpop.f32.mrf.mxu0
  %v577 = vadd.f32 %v94, %v576
  %v578 = vpop.f32.mrf.mxu0
  %579 = vmatprep.mubr.bf16.mxu0 0
  %580 = vmatmul.mubr.bf16.gmra.mxu0 %v335
  %v581 = vpop.f32.mrf.mxu0
  %v582 = vadd.f32 %v94, %v581
  %v583 = vpop.f32.mrf.mxu0
  %v584 = vpop.f32.mrf.mxu0
  %v585 = vadd.f32 %v94, %v584
  %v586 = vpop.f32.mrf.mxu0
  %587 = vmatprep.mubr.bf16.mxu0 0
  %588 = vmatmul.mubr.bf16.gmra.mxu0 %v338
  %v589 = vpop.f32.mrf.mxu0
  %v590 = vadd.f32 %v94, %v589
  %v591 = vpop.f32.mrf.mxu0
  %v592 = vpop.f32.mrf.mxu0
  %v593 = vadd.f32 %v94, %v592
  %v594 = vpop.f32.mrf.mxu0
  %595 = vmatprep.mubr.bf16.mxu0 0
  %596 = vmatmul.mubr.bf16.gmra.mxu0 %v341
  %v597 = vpop.f32.mrf.mxu0
  %v598 = vadd.f32 %v94, %v597
  %v599 = vpop.f32.mrf.mxu0
  %v600 = vpop.f32.mrf.mxu0
  %v601 = vadd.f32 %v94, %v600
  %v602 = vpop.f32.mrf.mxu0
  %603 = vmatprep.mubr.bf16.mxu0 0
  %604 = vmatmul.mubr.bf16.gmra.mxu0 %v344
  %v605 = vpop.f32.mrf.mxu0
  %v606 = vadd.f32 %v94, %v605
  %v607 = vpop.f32.mrf.mxu0
  %v608 = vpop.f32.mrf.mxu0
  %v609 = vadd.f32 %v94, %v608
  %v610 = vpop.f32.mrf.mxu0
  %611 = vmatprep.mubr.bf16.mxu0 0
  %612 = vmatmul.mubr.bf16.gmra.mxu0 %v347
  %v613 = vpop.f32.mrf.mxu0
  %v614 = vadd.f32 %v94, %v613
  %v615 = vpop.f32.mrf.mxu0
  %v616 = vpop.f32.mrf.mxu0
  %v617 = vadd.f32 %v94, %v616
  %v618 = vpop.f32.mrf.mxu0
  %619 = vmatprep.mubr.bf16.mxu0 0
  %620 = vmatmul.mubr.bf16.gmra.mxu0 %v350
  %v621 = vpop.f32.mrf.mxu0
  %v622 = vadd.f32 %v94, %v621
  %v623 = vpop.f32.mrf.mxu0
  %v624 = vpop.f32.mrf.mxu0
  %v625 = vadd.f32 %v94, %v624
  %v626 = vpop.f32.mrf.mxu0
  %627 = vmatprep.mubr.bf16.mxu0 0
  %628 = vmatmul.mubr.bf16.gmra.mxu0 %v353
  %v629 = vpop.f32.mrf.mxu0
  %v630 = vadd.f32 %v94, %v629
  %v631 = vpop.f32.mrf.mxu0
  %v632 = vpop.f32.mrf.mxu0
  %v633 = vadd.f32 %v94, %v632
  %v634 = vpop.f32.mrf.mxu0
  %635 = vmatprep.mubr.bf16.mxu0 0
  %636 = vmatmul.mubr.bf16.gmra.mxu0 %v356
  %v637 = vpop.f32.mrf.mxu0
  %v638 = vadd.f32 %v94, %v637
  %v639 = vpop.f32.mrf.mxu0
  %v640 = vpop.f32.mrf.mxu0
  %v641 = vadd.f32 %v94, %v640
  %v642 = vpop.f32.mrf.mxu0
  %643 = vmatprep.mubr.bf16.mxu0 0
  %644 = vmatmul.mubr.bf16.gmra.mxu0 %v359
  %v645 = vpop.f32.mrf.mxu0
  %v646 = vadd.f32 %v94, %v645
  %v647 = vpop.f32.mrf.mxu0
  %v648 = vpop.f32.mrf.mxu0
  %v649 = vadd.f32 %v94, %v648
  %v650 = vpop.f32.mrf.mxu0
  %651 = vmatprep.mubr.bf16.mxu0 0
  %652 = vmatmul.mubr.bf16.gmra.mxu0 %v362
  %v653 = vpop.f32.mrf.mxu0
  %v654 = vadd.f32 %v94, %v653
  %v655 = vpop.f32.mrf.mxu0
  %v656 = vpop.f32.mrf.mxu0
  %v657 = vadd.f32 %v94, %v656
  %v658 = vpop.f32.mrf.mxu0
  %659 = vdwg.mxu0
  %v660 = vxor.u32 %v406, 2147483648
  %v661 = vxor.u32 %v409, 2147483648
  %v662 = vxor.u32 %v414, 2147483648
  %v663 = vxor.u32 %v417, 2147483648
  %v664 = vxor.u32 %v422, 2147483648
  %v665 = vxor.u32 %v425, 2147483648
  %v666 = vxor.u32 %v430, 2147483648
  %v667 = vxor.u32 %v433, 2147483648
  %v668 = vxor.u32 %v438, 2147483648
  %v669 = vxor.u32 %v441, 2147483648
  %v670 = vxor.u32 %v446, 2147483648
  %v671 = vxor.u32 %v449, 2147483648
  %v672 = vxor.u32 %v454, 2147483648
  %v673 = vxor.u32 %v457, 2147483648
  %v674 = vxor.u32 %v462, 2147483648
  %v675 = vxor.u32 %v465, 2147483648
  %v676 = vxor.u32 %v470, 2147483648
  %v677 = vxor.u32 %v473, 2147483648
  %v678 = vxor.u32 %v478, 2147483648
  %v679 = vxor.u32 %v481, 2147483648
  %v680 = vxor.u32 %v486, 2147483648
  %v681 = vxor.u32 %v489, 2147483648
  %v682 = vxor.u32 %v494, 2147483648
  %v683 = vxor.u32 %v497, 2147483648
  %v684 = vxor.u32 %v502, 2147483648
  %v685 = vxor.u32 %v505, 2147483648
  %v686 = vxor.u32 %v510, 2147483648
  %v687 = vxor.u32 %v513, 2147483648
  %v688 = vxor.u32 %v518, 2147483648
  %v689 = vxor.u32 %v521, 2147483648
  %v690 = vxor.u32 %v526, 2147483648
  %v691 = vxor.u32 %v529, 2147483648
  %v692 = vxor.u32 %v534, 2147483648
  %v693 = vxor.u32 %v537, 2147483648
  %v694 = vxor.u32 %v542, 2147483648
  %v695 = vxor.u32 %v545, 2147483648
  %v696 = vxor.u32 %v550, 2147483648
  %v697 = vxor.u32 %v553, 2147483648
  %v698 = vxor.u32 %v558, 2147483648
  %v699 = vxor.u32 %v561, 2147483648
  %v700 = vxor.u32 %v566, 2147483648
  %v701 = vxor.u32 %v569, 2147483648
  %v702 = vxor.u32 %v574, 2147483648
  %v703 = vxor.u32 %v577, 2147483648
  %v704 = vxor.u32 %v582, 2147483648
  %v705 = vxor.u32 %v585, 2147483648
  %v706 = vxor.u32 %v590, 2147483648
  %v707 = vxor.u32 %v593, 2147483648
  %v708 = vxor.u32 %v598, 2147483648
  %v709 = vxor.u32 %v601, 2147483648
  %v710 = vxor.u32 %v606, 2147483648
  %v711 = vxor.u32 %v609, 2147483648
  %v712 = vxor.u32 %v614, 2147483648
  %v713 = vxor.u32 %v617, 2147483648
  %v714 = vxor.u32 %v622, 2147483648
  %v715 = vxor.u32 %v625, 2147483648
  %v716 = vxor.u32 %v630, 2147483648
  %v717 = vxor.u32 %v633, 2147483648
  %v718 = vxor.u32 %v638, 2147483648
  %v719 = vxor.u32 %v641, 2147483648
  %v720 = vxor.u32 %v646, 2147483648
  %v721 = vxor.u32 %v649, 2147483648
  %v722 = vxor.u32 %v654, 2147483648
  %v723 = vxor.u32 %v657, 2147483648
  %v724 = vmul.f32 %v660, 1.442695
  %v725 = vpow.pop %v724
  %v726 = vmul.f32 %v661, 1.442695
  %v727 = vpow.pop %v726
  %v728 = vmul.f32 %v662, 1.442695
  %v729 = vpow.pop %v728
  %v730 = vmul.f32 %v663, 1.442695
  %v731 = vpow.pop %v730
  %v732 = vmul.f32 %v664, 1.442695
  %v733 = vpow.pop %v732
  %v734 = vmul.f32 %v665, 1.442695
  %v735 = vpow.pop %v734
  %v736 = vmul.f32 %v666, 1.442695
  %v737 = vpow.pop %v736
  %v738 = vmul.f32 %v667, 1.442695
  %v739 = vpow.pop %v738
  %v740 = vmul.f32 %v668, 1.442695
  %v741 = vpow.pop %v740
  %v742 = vmul.f32 %v669, 1.442695
  %v743 = vpow.pop %v742
  %v744 = vmul.f32 %v670, 1.442695
  %v745 = vpow.pop %v744
  %v746 = vmul.f32 %v671, 1.442695
  %v747 = vpow.pop %v746
  %v748 = vmul.f32 %v672, 1.442695
  %v749 = vpow.pop %v748
  %v750 = vmul.f32 %v673, 1.442695
  %v751 = vpow.pop %v750
  %v752 = vmul.f32 %v674, 1.442695
  %v753 = vpow.pop %v752
  %v754 = vmul.f32 %v675, 1.442695
  %v755 = vpow.pop %v754
  %v756 = vmul.f32 %v676, 1.442695
  %v757 = vpow.pop %v756
  %v758 = vmul.f32 %v677, 1.442695
  %v759 = vpow.pop %v758
  %v760 = vmul.f32 %v678, 1.442695
  %v761 = vpow.pop %v760
  %v762 = vmul.f32 %v679, 1.442695
  %v763 = vpow.pop %v762
  %v764 = vmul.f32 %v680, 1.442695
  %v765 = vpow.pop %v764
  %v766 = vmul.f32 %v681, 1.442695
  %v767 = vpow.pop %v766
  %v768 = vmul.f32 %v682, 1.442695
  %v769 = vpow.pop %v768
  %v770 = vmul.f32 %v683, 1.442695
  %v771 = vpow.pop %v770
  %v772 = vmul.f32 %v684, 1.442695
  %v773 = vpow.pop %v772
  %v774 = vmul.f32 %v685, 1.442695
  %v775 = vpow.pop %v774
  %v776 = vmul.f32 %v686, 1.442695
  %v777 = vpow.pop %v776
  %v778 = vmul.f32 %v687, 1.442695
  %v779 = vpow.pop %v778
  %v780 = vmul.f32 %v688, 1.442695
  %v781 = vpow.pop %v780
  %v782 = vmul.f32 %v689, 1.442695
  %v783 = vpow.pop %v782
  %v784 = vmul.f32 %v690, 1.442695
  %v785 = vpow.pop %v784
  %v786 = vmul.f32 %v691, 1.442695
  %v787 = vpow.pop %v786
  %v788 = vmul.f32 %v692, 1.442695
  %v789 = vpow.pop %v788
  %v790 = vmul.f32 %v693, 1.442695
  %v791 = vpow.pop %v790
  %v792 = vmul.f32 %v694, 1.442695
  %v793 = vpow.pop %v792
  %v794 = vmul.f32 %v695, 1.442695
  %v795 = vpow.pop %v794
  %v796 = vmul.f32 %v696, 1.442695
  %v797 = vpow.pop %v796
  %v798 = vmul.f32 %v697, 1.442695
  %v799 = vpow.pop %v798
  %v800 = vmul.f32 %v698, 1.442695
  %v801 = vpow.pop %v800
  %v802 = vmul.f32 %v699, 1.442695
  %v803 = vpow.pop %v802
  %v804 = vmul.f32 %v700, 1.442695
  %v805 = vpow.pop %v804
  %v806 = vmul.f32 %v701, 1.442695
  %v807 = vpow.pop %v806
  %v808 = vmul.f32 %v702, 1.442695
  %v809 = vpow.pop %v808
  %v810 = vmul.f32 %v703, 1.442695
  %v811 = vpow.pop %v810
  %v812 = vmul.f32 %v704, 1.442695
  %v813 = vpow.pop %v812
  %v814 = vmul.f32 %v705, 1.442695
  %v815 = vpow.pop %v814
  %v816 = vmul.f32 %v706, 1.442695
  %v817 = vpow.pop %v816
  %v818 = vmul.f32 %v707, 1.442695
  %v819 = vpow.pop %v818
  %v820 = vmul.f32 %v708, 1.442695
  %v821 = vpow.pop %v820
  %v822 = vmul.f32 %v709, 1.442695
  %v823 = vpow.pop %v822
  %v824 = vmul.f32 %v710, 1.442695
  %v825 = vpow.pop %v824
  %v826 = vmul.f32 %v711, 1.442695
  %v827 = vpow.pop %v826
  %v828 = vmul.f32 %v712, 1.442695
  %v829 = vpow.pop %v828
  %v830 = vmul.f32 %v713, 1.442695
  %v831 = vpow.pop %v830
  %v832 = vmul.f32 %v714, 1.442695
  %v833 = vpow.pop %v832
  %v834 = vmul.f32 %v715, 1.442695
  %v835 = vpow.pop %v834
  %v836 = vmul.f32 %v716, 1.442695
  %v837 = vpow.pop %v836
  %v838 = vmul.f32 %v717, 1.442695
  %v839 = vpow.pop %v838
  %v840 = vmul.f32 %v718, 1.442695
  %v841 = vpow.pop %v840
  %v842 = vmul.f32 %v719, 1.442695
  %v843 = vpow.pop %v842
  %v844 = vmul.f32 %v720, 1.442695
  %v845 = vpow.pop %v844
  %v846 = vmul.f32 %v721, 1.442695
  %v847 = vpow.pop %v846
  %v848 = vmul.f32 %v722, 1.442695
  %v849 = vpow.pop %v848
  %v850 = vmul.f32 %v723, 1.442695
  %v851 = vpow.pop %v850
  %v852 = vadd.f32 %v725, 1.0
  %v853 = vadd.f32 %v727, 1.0
  %v854 = vadd.f32 %v729, 1.0
  %v855 = vadd.f32 %v731, 1.0
  %v856 = vadd.f32 %v733, 1.0
  %v857 = vadd.f32 %v735, 1.0
  %v858 = vadd.f32 %v737, 1.0
  %v859 = vadd.f32 %v739, 1.0
  %v860 = vadd.f32 %v741, 1.0
  %v861 = vadd.f32 %v743, 1.0
  %v862 = vadd.f32 %v745, 1.0
  %v863 = vadd.f32 %v747, 1.0
  %v864 = vadd.f32 %v749, 1.0
  %v865 = vadd.f32 %v751, 1.0
  %v866 = vadd.f32 %v753, 1.0
  %v867 = vadd.f32 %v755, 1.0
  %v868 = vadd.f32 %v757, 1.0
  %v869 = vadd.f32 %v759, 1.0
  %v870 = vadd.f32 %v761, 1.0
  %v871 = vadd.f32 %v763, 1.0
  %v872 = vadd.f32 %v765, 1.0
  %v873 = vadd.f32 %v767, 1.0
  %v874 = vadd.f32 %v769, 1.0
  %v875 = vadd.f32 %v771, 1.0
  %v876 = vadd.f32 %v773, 1.0
  %v877 = vadd.f32 %v775, 1.0
  %v878 = vadd.f32 %v777, 1.0
  %v879 = vadd.f32 %v779, 1.0
  %v880 = vadd.f32 %v781, 1.0
  %v881 = vadd.f32 %v783, 1.0
  %v882 = vadd.f32 %v785, 1.0
  %v883 = vadd.f32 %v787, 1.0
  %v884 = vadd.f32 %v789, 1.0
  %v885 = vadd.f32 %v791, 1.0
  %v886 = vadd.f32 %v793, 1.0
  %v887 = vadd.f32 %v795, 1.0
  %v888 = vadd.f32 %v797, 1.0
  %v889 = vadd.f32 %v799, 1.0
  %v890 = vadd.f32 %v801, 1.0
  %v891 = vadd.f32 %v803, 1.0
  %v892 = vadd.f32 %v805, 1.0
  %v893 = vadd.f32 %v807, 1.0
  %v894 = vadd.f32 %v809, 1.0
  %v895 = vadd.f32 %v811, 1.0
  %v896 = vadd.f32 %v813, 1.0
  %v897 = vadd.f32 %v815, 1.0
  %v898 = vadd.f32 %v817, 1.0
  %v899 = vadd.f32 %v819, 1.0
  %v900 = vadd.f32 %v821, 1.0
  %v901 = vadd.f32 %v823, 1.0
  %v902 = vadd.f32 %v825, 1.0
  %v903 = vadd.f32 %v827, 1.0
  %v904 = vadd.f32 %v829, 1.0
  %v905 = vadd.f32 %v831, 1.0
  %v906 = vadd.f32 %v833, 1.0
  %v907 = vadd.f32 %v835, 1.0
  %v908 = vadd.f32 %v837, 1.0
  %v909 = vadd.f32 %v839, 1.0
  %v910 = vadd.f32 %v841, 1.0
  %v911 = vadd.f32 %v843, 1.0
  %v912 = vadd.f32 %v845, 1.0
  %v913 = vadd.f32 %v847, 1.0
  %v914 = vadd.f32 %v849, 1.0
  %v915 = vadd.f32 %v851, 1.0
  %v916 = vrcp.pop %v852
  %v917 = vmul.f32 1.0, %v916
  %v918 = vrcp.pop %v853
  %v919 = vmul.f32 1.0, %v918
  %v920 = vrcp.pop %v854
  %v921 = vmul.f32 1.0, %v920
  %v922 = vrcp.pop %v855
  %v923 = vmul.f32 1.0, %v922
  %v924 = vrcp.pop %v856
  %v925 = vmul.f32 1.0, %v924
  %v926 = vrcp.pop %v857
  %v927 = vmul.f32 1.0, %v926
  %v928 = vrcp.pop %v858
  %v929 = vmul.f32 1.0, %v928
  %v930 = vrcp.pop %v859
  %v931 = vmul.f32 1.0, %v930
  %v932 = vrcp.pop %v860
  %v933 = vmul.f32 1.0, %v932
  %v934 = vrcp.pop %v861
  %v935 = vmul.f32 1.0, %v934
  %v936 = vrcp.pop %v862
  %v937 = vmul.f32 1.0, %v936
  %v938 = vrcp.pop %v863
  %v939 = vmul.f32 1.0, %v938
  %v940 = vrcp.pop %v864
  %v941 = vmul.f32 1.0, %v940
  %v942 = vrcp.pop %v865
  %v943 = vmul.f32 1.0, %v942
  %v944 = vrcp.pop %v866
  %v945 = vmul.f32 1.0, %v944
  %v946 = vrcp.pop %v867
  %v947 = vmul.f32 1.0, %v946
  %v948 = vrcp.pop %v868
  %v949 = vmul.f32 1.0, %v948
  %v950 = vrcp.pop %v869
  %v951 = vmul.f32 1.0, %v950
  %v952 = vrcp.pop %v870
  %v953 = vmul.f32 1.0, %v952
  %v954 = vrcp.pop %v871
  %v955 = vmul.f32 1.0, %v954
  %v956 = vrcp.pop %v872
  %v957 = vmul.f32 1.0, %v956
  %v958 = vrcp.pop %v873
  %v959 = vmul.f32 1.0, %v958
  %v960 = vrcp.pop %v874
  %v961 = vmul.f32 1.0, %v960
  %v962 = vrcp.pop %v875
  %v963 = vmul.f32 1.0, %v962
  %v964 = vrcp.pop %v876
  %v965 = vmul.f32 1.0, %v964
  %v966 = vrcp.pop %v877
  %v967 = vmul.f32 1.0, %v966
  %v968 = vrcp.pop %v878
  %v969 = vmul.f32 1.0, %v968
  %v970 = vrcp.pop %v879
  %v971 = vmul.f32 1.0, %v970
  %v972 = vrcp.pop %v880
  %v973 = vmul.f32 1.0, %v972
  %v974 = vrcp.pop %v881
  %v975 = vmul.f32 1.0, %v974
  %v976 = vrcp.pop %v882
  %v977 = vmul.f32 1.0, %v976
  %v978 = vrcp.pop %v883
  %v979 = vmul.f32 1.0, %v978
  %v980 = vrcp.pop %v884
  %v981 = vmul.f32 1.0, %v980
  %v982 = vrcp.pop %v885
  %v983 = vmul.f32 1.0, %v982
  %v984 = vrcp.pop %v886
  %v985 = vmul.f32 1.0, %v984
  %v986 = vrcp.pop %v887
  %v987 = vmul.f32 1.0, %v986
  %v988 = vrcp.pop %v888
  %v989 = vmul.f32 1.0, %v988
  %v990 = vrcp.pop %v889
  %v991 = vmul.f32 1.0, %v990
  %v992 = vrcp.pop %v890
  %v993 = vmul.f32 1.0, %v992
  %v994 = vrcp.pop %v891
  %v995 = vmul.f32 1.0, %v994
  %v996 = vrcp.pop %v892
  %v997 = vmul.f32 1.0, %v996
  %v998 = vrcp.pop %v893
  %v999 = vmul.f32 1.0, %v998
  %v1000 = vrcp.pop %v894
  %v1001 = vmul.f32 1.0, %v1000
  %v1002 = vrcp.pop %v895
  %v1003 = vmul.f32 1.0, %v1002
  %v1004 = vrcp.pop %v896
  %v1005 = vmul.f32 1.0, %v1004
  %v1006 = vrcp.pop %v897
  %v1007 = vmul.f32 1.0, %v1006
  %v1008 = vrcp.pop %v898
  %v1009 = vmul.f32 1.0, %v1008
  %v1010 = vrcp.pop %v899
  %v1011 = vmul.f32 1.0, %v1010
  %v1012 = vrcp.pop %v900
  %v1013 = vmul.f32 1.0, %v1012
  %v1014 = vrcp.pop %v901
  %v1015 = vmul.f32 1.0, %v1014
  %v1016 = vrcp.pop %v902
  %v1017 = vmul.f32 1.0, %v1016
  %v1018 = vrcp.pop %v903
  %v1019 = vmul.f32 1.0, %v1018
  %v1020 = vrcp.pop %v904
  %v1021 = vmul.f32 1.0, %v1020
  %v1022 = vrcp.pop %v905
  %v1023 = vmul.f32 1.0, %v1022
  %v1024 = vrcp.pop %v906
  %v1025 = vmul.f32 1.0, %v1024
  %v1026 = vrcp.pop %v907
  %v1027 = vmul.f32 1.0, %v1026
  %v1028 = vrcp.pop %v908
  %v1029 = vmul.f32 1.0, %v1028
  %v1030 = vrcp.pop %v909
  %v1031 = vmul.f32 1.0, %v1030
  %v1032 = vrcp.pop %v910
  %v1033 = vmul.f32 1.0, %v1032
  %v1034 = vrcp.pop %v911
  %v1035 = vmul.f32 1.0, %v1034
  %v1036 = vrcp.pop %v912
  %v1037 = vmul.f32 1.0, %v1036
  %v1038 = vrcp.pop %v913
  %v1039 = vmul.f32 1.0, %v1038
  %v1040 = vrcp.pop %v914
  %v1041 = vmul.f32 1.0, %v1040
  %v1042 = vrcp.pop %v915
  %v1043 = vmul.f32 1.0, %v1042
  %v1044 = vmul.f32 %v406, %v917
  %v1045 = vmul.f32 %v409, %v919
  %v1046 = vmul.f32 %v414, %v921
  %v1047 = vmul.f32 %v417, %v923
  %v1048 = vmul.f32 %v422, %v925
  %v1049 = vmul.f32 %v425, %v927
  %v1050 = vmul.f32 %v430, %v929
  %v1051 = vmul.f32 %v433, %v931
  %v1052 = vmul.f32 %v438, %v933
  %v1053 = vmul.f32 %v441, %v935
  %v1054 = vmul.f32 %v446, %v937
  %v1055 = vmul.f32 %v449, %v939
  %v1056 = vmul.f32 %v454, %v941
  %v1057 = vmul.f32 %v457, %v943
  %v1058 = vmul.f32 %v462, %v945
  %v1059 = vmul.f32 %v465, %v947
  %v1060 = vmul.f32 %v470, %v949
  %v1061 = vmul.f32 %v473, %v951
  %v1062 = vmul.f32 %v478, %v953
  %v1063 = vmul.f32 %v481, %v955
  %v1064 = vmul.f32 %v486, %v957
  %v1065 = vmul.f32 %v489, %v959
  %v1066 = vmul.f32 %v494, %v961
  %v1067 = vmul.f32 %v497, %v963
  %v1068 = vmul.f32 %v502, %v965
  %v1069 = vmul.f32 %v505, %v967
  %v1070 = vmul.f32 %v510, %v969
  %v1071 = vmul.f32 %v513, %v971
  %v1072 = vmul.f32 %v518, %v973
  %v1073 = vmul.f32 %v521, %v975
  %v1074 = vmul.f32 %v526, %v977
  %v1075 = vmul.f32 %v529, %v979
  %v1076 = vmul.f32 %v534, %v981
  %v1077 = vmul.f32 %v537, %v983
  %v1078 = vmul.f32 %v542, %v985
  %v1079 = vmul.f32 %v545, %v987
  %v1080 = vmul.f32 %v550, %v989
  %v1081 = vmul.f32 %v553, %v991
  %v1082 = vmul.f32 %v558, %v993
  %v1083 = vmul.f32 %v561, %v995
  %v1084 = vmul.f32 %v566, %v997
  %v1085 = vmul.f32 %v569, %v999
  %v1086 = vmul.f32 %v574, %v1001
  %v1087 = vmul.f32 %v577, %v1003
  %v1088 = vmul.f32 %v582, %v1005
  %v1089 = vmul.f32 %v585, %v1007
  %v1090 = vmul.f32 %v590, %v1009
  %v1091 = vmul.f32 %v593, %v1011
  %v1092 = vmul.f32 %v598, %v1013
  %v1093 = vmul.f32 %v601, %v1015
  %v1094 = vmul.f32 %v606, %v1017
  %v1095 = vmul.f32 %v609, %v1019
  %v1096 = vmul.f32 %v614, %v1021
  %v1097 = vmul.f32 %v617, %v1023
  %v1098 = vmul.f32 %v622, %v1025
  %v1099 = vmul.f32 %v625, %v1027
  %v1100 = vmul.f32 %v630, %v1029
  %v1101 = vmul.f32 %v633, %v1031
  %v1102 = vmul.f32 %v638, %v1033
  %v1103 = vmul.f32 %v641, %v1035
  %v1104 = vmul.f32 %v646, %v1037
  %v1105 = vmul.f32 %v649, %v1039
  %v1106 = vmul.f32 %v654, %v1041
  %v1107 = vmul.f32 %v657, %v1043
  %v1108 = vpack.c.bf16 %v1045, %v1044
  %v1109 = vpack.c.bf16 %v1047, %v1046
  %v1110 = vpack.c.bf16 %v1049, %v1048
  %v1111 = vpack.c.bf16 %v1051, %v1050
  %v1112 = vpack.c.bf16 %v1053, %v1052
  %v1113 = vpack.c.bf16 %v1055, %v1054
  %v1114 = vpack.c.bf16 %v1057, %v1056
  %v1115 = vpack.c.bf16 %v1059, %v1058
  %v1116 = vpack.c.bf16 %v1061, %v1060
  %v1117 = vpack.c.bf16 %v1063, %v1062
  %v1118 = vpack.c.bf16 %v1065, %v1064
  %v1119 = vpack.c.bf16 %v1067, %v1066
  %v1120 = vpack.c.bf16 %v1069, %v1068
  %v1121 = vpack.c.bf16 %v1071, %v1070
  %v1122 = vpack.c.bf16 %v1073, %v1072
  %v1123 = vpack.c.bf16 %v1075, %v1074
  %v1124 = vpack.c.bf16 %v1077, %v1076
  %v1125 = vpack.c.bf16 %v1079, %v1078
  %v1126 = vpack.c.bf16 %v1081, %v1080
  %v1127 = vpack.c.bf16 %v1083, %v1082
  %v1128 = vpack.c.bf16 %v1085, %v1084
  %v1129 = vpack.c.bf16 %v1087, %v1086
  %v1130 = vpack.c.bf16 %v1089, %v1088
  %v1131 = vpack.c.bf16 %v1091, %v1090
  %v1132 = vpack.c.bf16 %v1093, %v1092
  %v1133 = vpack.c.bf16 %v1095, %v1094
  %v1134 = vpack.c.bf16 %v1097, %v1096
  %v1135 = vpack.c.bf16 %v1099, %v1098
  %v1136 = vpack.c.bf16 %v1101, %v1100
  %v1137 = vpack.c.bf16 %v1103, %v1102
  %v1138 = vpack.c.bf16 %v1105, %v1104
  %v1139 = vpack.c.bf16 %v1107, %v1106
  %v1140 = vld [vmem:[%s3] sm:$0xff]
  %v1141 = vld [vmem:[%s3 + $0x8] sm:$0xff]
  %v1142 = vld [vmem:[%s3 + $0x10] sm:$0xff]
  %v1143 = vld [vmem:[%s3 + $0x18] sm:$0xff]
  %v1144 = vld [vmem:[%s3 + $0x20] sm:$0xff]
  %v1145 = vld [vmem:[%s3 + $0x28] sm:$0xff]
  %v1146 = vld [vmem:[%s4] sm:$0x3]
  %v1148 = vlaneseq
  %v1149 = vshrl.u32 %v1148, 7
  %v1150 = vsub.s32 0, %v1149
  %v1151 = vrot.slane %v1146, %v1150
  %v1152 = vlaneseq
  %v1153 = vshrl.u32 %v1152, 7
  %v1154 = vsub.s32 1, %v1153
  %v1155 = vrot.slane %v1146, %v1154
  %v1164 = vunpack.c.l.b16 %v1140
  %v1165 = vunpack.c.h.b16 %v1140
  %v1166 = vunpack.c.l.b16 %v1141
  %v1167 = vunpack.c.h.b16 %v1141
  %v1168 = vunpack.c.l.b16 %v1142
  %v1169 = vunpack.c.h.b16 %v1142
  %v1170 = vunpack.c.l.b16 %v1143
  %v1171 = vunpack.c.h.b16 %v1143
  %v1172 = vunpack.c.l.b16 %v1144
  %v1173 = vunpack.c.h.b16 %v1144
  %v1174 = vunpack.c.l.b16 %v1145
  %v1175 = vunpack.c.h.b16 %v1145
  %v1176 = vpack.c.b16 %v1166, %v1164
  %v1177 = vpack.c.b16 %v1167, %v1165
  %v1178 = vpack.c.b16 %v1170, %v1168
  %v1179 = vpack.c.b16 %v1171, %v1169
  %v1180 = vpack.c.b16 %v1174, %v1172
  %v1181 = vpack.c.b16 %v1175, %v1173
  %vm1188 = vcmask 392192
  %v1190 = vsel %vm1188, %v1108, 0
  %v1193 = vsel %vm1188, %v1109, 0
  %v1196 = vsel %vm1188, %v1110, 0
  %v1199 = vsel %vm1188, %v1111, 0
  %v1202 = vsel %vm1188, %v1112, 0
  %v1205 = vsel %vm1188, %v1113, 0
  %v1208 = vsel %vm1188, %v1114, 0
  %v1211 = vsel %vm1188, %v1115, 0
  %v1214 = vsel %vm1188, %v1116, 0
  %v1217 = vsel %vm1188, %v1117, 0
  %v1220 = vsel %vm1188, %v1118, 0
  %v1223 = vsel %vm1188, %v1119, 0
  %v1226 = vsel %vm1188, %v1120, 0
  %v1229 = vsel %vm1188, %v1121, 0
  %v1232 = vsel %vm1188, %v1122, 0
  %v1235 = vsel %vm1188, %v1123, 0
  %v1238 = vsel %vm1188, %v1124, 0
  %v1241 = vsel %vm1188, %v1125, 0
  %v1244 = vsel %vm1188, %v1126, 0
  %v1247 = vsel %vm1188, %v1127, 0
  %v1250 = vsel %vm1188, %v1128, 0
  %v1253 = vsel %vm1188, %v1129, 0
  %v1256 = vsel %vm1188, %v1130, 0
  %v1259 = vsel %vm1188, %v1131, 0
  %v1262 = vsel %vm1188, %v1132, 0
  %v1265 = vsel %vm1188, %v1133, 0
  %v1268 = vsel %vm1188, %v1134, 0
  %v1271 = vsel %vm1188, %v1135, 0
  %v1274 = vsel %vm1188, %v1136, 0
  %v1277 = vsel %vm1188, %v1137, 0
  %v1280 = vsel %vm1188, %v1138, 0
  %v1283 = vsel %vm1188, %v1139, 0
  %1285 = vmatprep.subr.bf16.mxu0 0
  %1286 = vmatpush1.bf16.msra.mxu0 0
  %1287 = vmatprep.subr.bf16.mxu0 0
  %1288 = vmatpush1.bf16.msra.mxu0 0
  %1289 = vmatprep.subr.bf16.mxu0 0
  %1290 = vmatpush1.bf16.msra.mxu0 0
  %1291 = vmatprep.subr.bf16.mxu0 0
  %1292 = vmatpush1.bf16.msra.mxu0 0
  %1293 = vmatprep.subr.bf16.mxu0 0
  %1294 = vmatpush1.bf16.msra.mxu0 0
  %1295 = vmatprep.subr.bf16.mxu0 %v1181
  %1296 = vmatpush1.bf16.msra.mxu0 %v1180
  %1297 = vmatprep.subr.bf16.mxu0 %v1179
  %1298 = vmatpush1.bf16.msra.mxu0 %v1178
  %1299 = vmatprep.subr.bf16.mxu0 %v1177
  %1300 = vmatpush1.bf16.msra.mxu0 %v1176
  %1301 = vmatprep.subr.bf16.mxu0 0
  %1302 = vmatpush2.bf16.msra.mxu0 0
  %1303 = vmatprep.subr.bf16.mxu0 0
  %1304 = vmatpush2.bf16.msra.mxu0 0
  %1305 = vmatprep.subr.bf16.mxu0 0
  %1306 = vmatpush2.bf16.msra.mxu0 0
  %1307 = vmatprep.subr.bf16.mxu0 0
  %1308 = vmatpush2.bf16.msra.mxu0 0
  %1309 = vmatprep.subr.bf16.mxu0 0
  %1310 = vmatpush2.bf16.msra.mxu0 0
  %1311 = vmatprep.subr.bf16.mxu0 0
  %1312 = vmatpush2.bf16.msra.mxu0 0
  %1313 = vmatprep.subr.bf16.mxu0 0
  %1314 = vmatpush2.bf16.msra.mxu0 0
  %1315 = vmatprep.subr.bf16.mxu0 0
  %1316 = vmatpush2.bf16.msra.mxu0 0
  %1317 = vmatprep.mubr.bf16.mxu0 0
  %1318 = vmatmul.mubr.bf16.gmra.mxu0 %v1190
  %v1319 = vpop.f32.mrf.mxu0
  %v1320 = vadd.f32 %v1151, %v1319
  %v1321 = vpop.f32.mrf.mxu0
  %v1322 = vadd.f32 %v1155, %v1321
  %v1323 = vpop.f32.mrf.mxu0
  %v1324 = vadd.f32 %v1151, %v1323
  %v1325 = vpop.f32.mrf.mxu0
  %v1326 = vadd.f32 %v1155, %v1325
  %1327 = vmatprep.mubr.bf16.mxu0 0
  %1328 = vmatmul.mubr.bf16.gmra.mxu0 %v1193
  %v1329 = vpop.f32.mrf.mxu0
  %v1330 = vadd.f32 %v1151, %v1329
  %v1331 = vpop.f32.mrf.mxu0
  %v1332 = vadd.f32 %v1155, %v1331
  %v1333 = vpop.f32.mrf.mxu0
  %v1334 = vadd.f32 %v1151, %v1333
  %v1335 = vpop.f32.mrf.mxu0
  %v1336 = vadd.f32 %v1155, %v1335
  %1337 = vmatprep.mubr.bf16.mxu0 0
  %1338 = vmatmul.mubr.bf16.gmra.mxu0 %v1196
  %v1339 = vpop.f32.mrf.mxu0
  %v1340 = vadd.f32 %v1151, %v1339
  %v1341 = vpop.f32.mrf.mxu0
  %v1342 = vadd.f32 %v1155, %v1341
  %v1343 = vpop.f32.mrf.mxu0
  %v1344 = vadd.f32 %v1151, %v1343
  %v1345 = vpop.f32.mrf.mxu0
  %v1346 = vadd.f32 %v1155, %v1345
  %1347 = vmatprep.mubr.bf16.mxu0 0
  %1348 = vmatmul.mubr.bf16.gmra.mxu0 %v1199
  %v1349 = vpop.f32.mrf.mxu0
  %v1350 = vadd.f32 %v1151, %v1349
  %v1351 = vpop.f32.mrf.mxu0
  %v1352 = vadd.f32 %v1155, %v1351
  %v1353 = vpop.f32.mrf.mxu0
  %v1354 = vadd.f32 %v1151, %v1353
  %v1355 = vpop.f32.mrf.mxu0
  %v1356 = vadd.f32 %v1155, %v1355
  %1357 = vmatprep.mubr.bf16.mxu0 0
  %1358 = vmatmul.mubr.bf16.gmra.mxu0 %v1202
  %v1359 = vpop.f32.mrf.mxu0
  %v1360 = vadd.f32 %v1151, %v1359
  %v1361 = vpop.f32.mrf.mxu0
  %v1362 = vadd.f32 %v1155, %v1361
  %v1363 = vpop.f32.mrf.mxu0
  %v1364 = vadd.f32 %v1151, %v1363
  %v1365 = vpop.f32.mrf.mxu0
  %v1366 = vadd.f32 %v1155, %v1365
  %1367 = vmatprep.mubr.bf16.mxu0 0
  %1368 = vmatmul.mubr.bf16.gmra.mxu0 %v1205
  %v1369 = vpop.f32.mrf.mxu0
  %v1370 = vadd.f32 %v1151, %v1369
  %v1371 = vpop.f32.mrf.mxu0
  %v1372 = vadd.f32 %v1155, %v1371
  %v1373 = vpop.f32.mrf.mxu0
  %v1374 = vadd.f32 %v1151, %v1373
  %v1375 = vpop.f32.mrf.mxu0
  %v1376 = vadd.f32 %v1155, %v1375
  %1377 = vmatprep.mubr.bf16.mxu0 0
  %1378 = vmatmul.mubr.bf16.gmra.mxu0 %v1208
  %v1379 = vpop.f32.mrf.mxu0
  %v1380 = vadd.f32 %v1151, %v1379
  %v1381 = vpop.f32.mrf.mxu0
  %v1382 = vadd.f32 %v1155, %v1381
  %v1383 = vpop.f32.mrf.mxu0
  %v1384 = vadd.f32 %v1151, %v1383
  %v1385 = vpop.f32.mrf.mxu0
  %v1386 = vadd.f32 %v1155, %v1385
  %1387 = vmatprep.mubr.bf16.mxu0 0
  %1388 = vmatmul.mubr.bf16.gmra.mxu0 %v1211
  %v1389 = vpop.f32.mrf.mxu0
  %v1390 = vadd.f32 %v1151, %v1389
  %v1391 = vpop.f32.mrf.mxu0
  %v1392 = vadd.f32 %v1155, %v1391
  %v1393 = vpop.f32.mrf.mxu0
  %v1394 = vadd.f32 %v1151, %v1393
  %v1395 = vpop.f32.mrf.mxu0
  %v1396 = vadd.f32 %v1155, %v1395
  %1397 = vmatprep.mubr.bf16.mxu0 0
  %1398 = vmatmul.mubr.bf16.gmra.mxu0 %v1214
  %v1399 = vpop.f32.mrf.mxu0
  %v1400 = vadd.f32 %v1151, %v1399
  %v1401 = vpop.f32.mrf.mxu0
  %v1402 = vadd.f32 %v1155, %v1401
  %v1403 = vpop.f32.mrf.mxu0
  %v1404 = vadd.f32 %v1151, %v1403
  %v1405 = vpop.f32.mrf.mxu0
  %v1406 = vadd.f32 %v1155, %v1405
  %1407 = vmatprep.mubr.bf16.mxu0 0
  %1408 = vmatmul.mubr.bf16.gmra.mxu0 %v1217
  %v1409 = vpop.f32.mrf.mxu0
  %v1410 = vadd.f32 %v1151, %v1409
  %v1411 = vpop.f32.mrf.mxu0
  %v1412 = vadd.f32 %v1155, %v1411
  %v1413 = vpop.f32.mrf.mxu0
  %v1414 = vadd.f32 %v1151, %v1413
  %v1415 = vpop.f32.mrf.mxu0
  %v1416 = vadd.f32 %v1155, %v1415
  %1417 = vmatprep.mubr.bf16.mxu0 0
  %1418 = vmatmul.mubr.bf16.gmra.mxu0 %v1220
  %v1419 = vpop.f32.mrf.mxu0
  %v1420 = vadd.f32 %v1151, %v1419
  %v1421 = vpop.f32.mrf.mxu0
  %v1422 = vadd.f32 %v1155, %v1421
  %v1423 = vpop.f32.mrf.mxu0
  %v1424 = vadd.f32 %v1151, %v1423
  %v1425 = vpop.f32.mrf.mxu0
  %v1426 = vadd.f32 %v1155, %v1425
  %1427 = vmatprep.mubr.bf16.mxu0 0
  %1428 = vmatmul.mubr.bf16.gmra.mxu0 %v1223
  %v1429 = vpop.f32.mrf.mxu0
  %v1430 = vadd.f32 %v1151, %v1429
  %v1431 = vpop.f32.mrf.mxu0
  %v1432 = vadd.f32 %v1155, %v1431
  %v1433 = vpop.f32.mrf.mxu0
  %v1434 = vadd.f32 %v1151, %v1433
  %v1435 = vpop.f32.mrf.mxu0
  %v1436 = vadd.f32 %v1155, %v1435
  %1437 = vmatprep.mubr.bf16.mxu0 0
  %1438 = vmatmul.mubr.bf16.gmra.mxu0 %v1226
  %v1439 = vpop.f32.mrf.mxu0
  %v1440 = vadd.f32 %v1151, %v1439
  %v1441 = vpop.f32.mrf.mxu0
  %v1442 = vadd.f32 %v1155, %v1441
  %v1443 = vpop.f32.mrf.mxu0
  %v1444 = vadd.f32 %v1151, %v1443
  %v1445 = vpop.f32.mrf.mxu0
  %v1446 = vadd.f32 %v1155, %v1445
  %1447 = vmatprep.mubr.bf16.mxu0 0
  %1448 = vmatmul.mubr.bf16.gmra.mxu0 %v1229
  %v1449 = vpop.f32.mrf.mxu0
  %v1450 = vadd.f32 %v1151, %v1449
  %v1451 = vpop.f32.mrf.mxu0
  %v1452 = vadd.f32 %v1155, %v1451
  %v1453 = vpop.f32.mrf.mxu0
  %v1454 = vadd.f32 %v1151, %v1453
  %v1455 = vpop.f32.mrf.mxu0
  %v1456 = vadd.f32 %v1155, %v1455
  %1457 = vmatprep.mubr.bf16.mxu0 0
  %1458 = vmatmul.mubr.bf16.gmra.mxu0 %v1232
  %v1459 = vpop.f32.mrf.mxu0
  %v1460 = vadd.f32 %v1151, %v1459
  %v1461 = vpop.f32.mrf.mxu0
  %v1462 = vadd.f32 %v1155, %v1461
  %v1463 = vpop.f32.mrf.mxu0
  %v1464 = vadd.f32 %v1151, %v1463
  %v1465 = vpop.f32.mrf.mxu0
  %v1466 = vadd.f32 %v1155, %v1465
  %1467 = vmatprep.mubr.bf16.mxu0 0
  %1468 = vmatmul.mubr.bf16.gmra.mxu0 %v1235
  %v1469 = vpop.f32.mrf.mxu0
  %v1470 = vadd.f32 %v1151, %v1469
  %v1471 = vpop.f32.mrf.mxu0
  %v1472 = vadd.f32 %v1155, %v1471
  %v1473 = vpop.f32.mrf.mxu0
  %v1474 = vadd.f32 %v1151, %v1473
  %v1475 = vpop.f32.mrf.mxu0
  %v1476 = vadd.f32 %v1155, %v1475
  %1477 = vmatprep.mubr.bf16.mxu0 0
  %1478 = vmatmul.mubr.bf16.gmra.mxu0 %v1238
  %v1479 = vpop.f32.mrf.mxu0
  %v1480 = vadd.f32 %v1151, %v1479
  %v1481 = vpop.f32.mrf.mxu0
  %v1482 = vadd.f32 %v1155, %v1481
  %v1483 = vpop.f32.mrf.mxu0
  %v1484 = vadd.f32 %v1151, %v1483
  %v1485 = vpop.f32.mrf.mxu0
  %v1486 = vadd.f32 %v1155, %v1485
  %1487 = vmatprep.mubr.bf16.mxu0 0
  %1488 = vmatmul.mubr.bf16.gmra.mxu0 %v1241
  %v1489 = vpop.f32.mrf.mxu0
  %v1490 = vadd.f32 %v1151, %v1489
  %v1491 = vpop.f32.mrf.mxu0
  %v1492 = vadd.f32 %v1155, %v1491
  %v1493 = vpop.f32.mrf.mxu0
  %v1494 = vadd.f32 %v1151, %v1493
  %v1495 = vpop.f32.mrf.mxu0
  %v1496 = vadd.f32 %v1155, %v1495
  %1497 = vmatprep.mubr.bf16.mxu0 0
  %1498 = vmatmul.mubr.bf16.gmra.mxu0 %v1244
  %v1499 = vpop.f32.mrf.mxu0
  %v1500 = vadd.f32 %v1151, %v1499
  %v1501 = vpop.f32.mrf.mxu0
  %v1502 = vadd.f32 %v1155, %v1501
  %v1503 = vpop.f32.mrf.mxu0
  %v1504 = vadd.f32 %v1151, %v1503
  %v1505 = vpop.f32.mrf.mxu0
  %v1506 = vadd.f32 %v1155, %v1505
  %1507 = vmatprep.mubr.bf16.mxu0 0
  %1508 = vmatmul.mubr.bf16.gmra.mxu0 %v1247
  %v1509 = vpop.f32.mrf.mxu0
  %v1510 = vadd.f32 %v1151, %v1509
  %v1511 = vpop.f32.mrf.mxu0
  %v1512 = vadd.f32 %v1155, %v1511
  %v1513 = vpop.f32.mrf.mxu0
  %v1514 = vadd.f32 %v1151, %v1513
  %v1515 = vpop.f32.mrf.mxu0
  %v1516 = vadd.f32 %v1155, %v1515
  %1517 = vmatprep.mubr.bf16.mxu0 0
  %1518 = vmatmul.mubr.bf16.gmra.mxu0 %v1250
  %v1519 = vpop.f32.mrf.mxu0
  %v1520 = vadd.f32 %v1151, %v1519
  %v1521 = vpop.f32.mrf.mxu0
  %v1522 = vadd.f32 %v1155, %v1521
  %v1523 = vpop.f32.mrf.mxu0
  %v1524 = vadd.f32 %v1151, %v1523
  %v1525 = vpop.f32.mrf.mxu0
  %v1526 = vadd.f32 %v1155, %v1525
  %1527 = vmatprep.mubr.bf16.mxu0 0
  %1528 = vmatmul.mubr.bf16.gmra.mxu0 %v1253
  %v1529 = vpop.f32.mrf.mxu0
  %v1530 = vadd.f32 %v1151, %v1529
  %v1531 = vpop.f32.mrf.mxu0
  %v1532 = vadd.f32 %v1155, %v1531
  %v1533 = vpop.f32.mrf.mxu0
  %v1534 = vadd.f32 %v1151, %v1533
  %v1535 = vpop.f32.mrf.mxu0
  %v1536 = vadd.f32 %v1155, %v1535
  %1537 = vmatprep.mubr.bf16.mxu0 0
  %1538 = vmatmul.mubr.bf16.gmra.mxu0 %v1256
  %v1539 = vpop.f32.mrf.mxu0
  %v1540 = vadd.f32 %v1151, %v1539
  %v1541 = vpop.f32.mrf.mxu0
  %v1542 = vadd.f32 %v1155, %v1541
  %v1543 = vpop.f32.mrf.mxu0
  %v1544 = vadd.f32 %v1151, %v1543
  %v1545 = vpop.f32.mrf.mxu0
  %v1546 = vadd.f32 %v1155, %v1545
  %1547 = vmatprep.mubr.bf16.mxu0 0
  %1548 = vmatmul.mubr.bf16.gmra.mxu0 %v1259
  %v1549 = vpop.f32.mrf.mxu0
  %v1550 = vadd.f32 %v1151, %v1549
  %v1551 = vpop.f32.mrf.mxu0
  %v1552 = vadd.f32 %v1155, %v1551
  %v1553 = vpop.f32.mrf.mxu0
  %v1554 = vadd.f32 %v1151, %v1553
  %v1555 = vpop.f32.mrf.mxu0
  %v1556 = vadd.f32 %v1155, %v1555
  %1557 = vmatprep.mubr.bf16.mxu0 0
  %1558 = vmatmul.mubr.bf16.gmra.mxu0 %v1262
  %v1559 = vpop.f32.mrf.mxu0
  %v1560 = vadd.f32 %v1151, %v1559
  %v1561 = vpop.f32.mrf.mxu0
  %v1562 = vadd.f32 %v1155, %v1561
  %v1563 = vpop.f32.mrf.mxu0
  %v1564 = vadd.f32 %v1151, %v1563
  %v1565 = vpop.f32.mrf.mxu0
  %v1566 = vadd.f32 %v1155, %v1565
  %1567 = vmatprep.mubr.bf16.mxu0 0
  %1568 = vmatmul.mubr.bf16.gmra.mxu0 %v1265
  %v1569 = vpop.f32.mrf.mxu0
  %v1570 = vadd.f32 %v1151, %v1569
  %v1571 = vpop.f32.mrf.mxu0
  %v1572 = vadd.f32 %v1155, %v1571
  %v1573 = vpop.f32.mrf.mxu0
  %v1574 = vadd.f32 %v1151, %v1573
  %v1575 = vpop.f32.mrf.mxu0
  %v1576 = vadd.f32 %v1155, %v1575
  %1577 = vmatprep.mubr.bf16.mxu0 0
  %1578 = vmatmul.mubr.bf16.gmra.mxu0 %v1268
  %v1579 = vpop.f32.mrf.mxu0
  %v1580 = vadd.f32 %v1151, %v1579
  %v1581 = vpop.f32.mrf.mxu0
  %v1582 = vadd.f32 %v1155, %v1581
  %v1583 = vpop.f32.mrf.mxu0
  %v1584 = vadd.f32 %v1151, %v1583
  %v1585 = vpop.f32.mrf.mxu0
  %v1586 = vadd.f32 %v1155, %v1585
  %1587 = vmatprep.mubr.bf16.mxu0 0
  %1588 = vmatmul.mubr.bf16.gmra.mxu0 %v1271
  %v1589 = vpop.f32.mrf.mxu0
  %v1590 = vadd.f32 %v1151, %v1589
  %v1591 = vpop.f32.mrf.mxu0
  %v1592 = vadd.f32 %v1155, %v1591
  %v1593 = vpop.f32.mrf.mxu0
  %v1594 = vadd.f32 %v1151, %v1593
  %v1595 = vpop.f32.mrf.mxu0
  %v1596 = vadd.f32 %v1155, %v1595
  %1597 = vmatprep.mubr.bf16.mxu0 0
  %1598 = vmatmul.mubr.bf16.gmra.mxu0 %v1274
  %v1599 = vpop.f32.mrf.mxu0
  %v1600 = vadd.f32 %v1151, %v1599
  %v1601 = vpop.f32.mrf.mxu0
  %v1602 = vadd.f32 %v1155, %v1601
  %v1603 = vpop.f32.mrf.mxu0
  %v1604 = vadd.f32 %v1151, %v1603
  %v1605 = vpop.f32.mrf.mxu0
  %v1606 = vadd.f32 %v1155, %v1605
  %1607 = vmatprep.mubr.bf16.mxu0 0
  %1608 = vmatmul.mubr.bf16.gmra.mxu0 %v1277
  %v1609 = vpop.f32.mrf.mxu0
  %v1610 = vadd.f32 %v1151, %v1609
  %v1611 = vpop.f32.mrf.mxu0
  %v1612 = vadd.f32 %v1155, %v1611
  %v1613 = vpop.f32.mrf.mxu0
  %v1614 = vadd.f32 %v1151, %v1613
  %v1615 = vpop.f32.mrf.mxu0
  %v1616 = vadd.f32 %v1155, %v1615
  %1617 = vmatprep.mubr.bf16.mxu0 0
  %1618 = vmatmul.mubr.bf16.gmra.mxu0 %v1280
  %v1619 = vpop.f32.mrf.mxu0
  %v1620 = vadd.f32 %v1151, %v1619
  %v1621 = vpop.f32.mrf.mxu0
  %v1622 = vadd.f32 %v1155, %v1621
  %v1623 = vpop.f32.mrf.mxu0
  %v1624 = vadd.f32 %v1151, %v1623
  %v1625 = vpop.f32.mrf.mxu0
  %v1626 = vadd.f32 %v1155, %v1625
  %1627 = vmatprep.mubr.bf16.mxu0 0
  %1628 = vmatmul.mubr.bf16.gmra.mxu0 %v1283
  %v1629 = vpop.f32.mrf.mxu0
  %v1630 = vadd.f32 %v1151, %v1629
  %v1631 = vpop.f32.mrf.mxu0
  %v1632 = vadd.f32 %v1155, %v1631
  %v1633 = vpop.f32.mrf.mxu0
  %v1634 = vadd.f32 %v1151, %v1633
  %v1635 = vpop.f32.mrf.mxu0
  %v1636 = vadd.f32 %v1155, %v1635
  %1637 = vdwg.mxu0
  %v1638 = vxor.u32 %v1320, 2147483648
  %v1639 = vxor.u32 %v1322, 2147483648
  %v1640 = vxor.u32 %v1324, 2147483648
  %v1641 = vxor.u32 %v1326, 2147483648
  %v1642 = vxor.u32 %v1330, 2147483648
  %v1643 = vxor.u32 %v1332, 2147483648
  %v1644 = vxor.u32 %v1334, 2147483648
  %v1645 = vxor.u32 %v1336, 2147483648
  %v1646 = vxor.u32 %v1340, 2147483648
  %v1647 = vxor.u32 %v1342, 2147483648
  %v1648 = vxor.u32 %v1344, 2147483648
  %v1649 = vxor.u32 %v1346, 2147483648
  %v1650 = vxor.u32 %v1350, 2147483648
  %v1651 = vxor.u32 %v1352, 2147483648
  %v1652 = vxor.u32 %v1354, 2147483648
  %v1653 = vxor.u32 %v1356, 2147483648
  %v1654 = vxor.u32 %v1360, 2147483648
  %v1655 = vxor.u32 %v1362, 2147483648
  %v1656 = vxor.u32 %v1364, 2147483648
  %v1657 = vxor.u32 %v1366, 2147483648
  %v1658 = vxor.u32 %v1370, 2147483648
  %v1659 = vxor.u32 %v1372, 2147483648
  %v1660 = vxor.u32 %v1374, 2147483648
  %v1661 = vxor.u32 %v1376, 2147483648
  %v1662 = vxor.u32 %v1380, 2147483648
  %v1663 = vxor.u32 %v1382, 2147483648
  %v1664 = vxor.u32 %v1384, 2147483648
  %v1665 = vxor.u32 %v1386, 2147483648
  %v1666 = vxor.u32 %v1390, 2147483648
  %v1667 = vxor.u32 %v1392, 2147483648
  %v1668 = vxor.u32 %v1394, 2147483648
  %v1669 = vxor.u32 %v1396, 2147483648
  %v1670 = vxor.u32 %v1400, 2147483648
  %v1671 = vxor.u32 %v1402, 2147483648
  %v1672 = vxor.u32 %v1404, 2147483648
  %v1673 = vxor.u32 %v1406, 2147483648
  %v1674 = vxor.u32 %v1410, 2147483648
  %v1675 = vxor.u32 %v1412, 2147483648
  %v1676 = vxor.u32 %v1414, 2147483648
  %v1677 = vxor.u32 %v1416, 2147483648
  %v1678 = vxor.u32 %v1420, 2147483648
  %v1679 = vxor.u32 %v1422, 2147483648
  %v1680 = vxor.u32 %v1424, 2147483648
  %v1681 = vxor.u32 %v1426, 2147483648
  %v1682 = vxor.u32 %v1430, 2147483648
  %v1683 = vxor.u32 %v1432, 2147483648
  %v1684 = vxor.u32 %v1434, 2147483648
  %v1685 = vxor.u32 %v1436, 2147483648
  %v1686 = vxor.u32 %v1440, 2147483648
  %v1687 = vxor.u32 %v1442, 2147483648
  %v1688 = vxor.u32 %v1444, 2147483648
  %v1689 = vxor.u32 %v1446, 2147483648
  %v1690 = vxor.u32 %v1450, 2147483648
  %v1691 = vxor.u32 %v1452, 2147483648
  %v1692 = vxor.u32 %v1454, 2147483648
  %v1693 = vxor.u32 %v1456, 2147483648
  %v1694 = vxor.u32 %v1460, 2147483648
  %v1695 = vxor.u32 %v1462, 2147483648
  %v1696 = vxor.u32 %v1464, 2147483648
  %v1697 = vxor.u32 %v1466, 2147483648
  %v1698 = vxor.u32 %v1470, 2147483648
  %v1699 = vxor.u32 %v1472, 2147483648
  %v1700 = vxor.u32 %v1474, 2147483648
  %v1701 = vxor.u32 %v1476, 2147483648
  %v1702 = vxor.u32 %v1480, 2147483648
  %v1703 = vxor.u32 %v1482, 2147483648
  %v1704 = vxor.u32 %v1484, 2147483648
  %v1705 = vxor.u32 %v1486, 2147483648
  %v1706 = vxor.u32 %v1490, 2147483648
  %v1707 = vxor.u32 %v1492, 2147483648
  %v1708 = vxor.u32 %v1494, 2147483648
  %v1709 = vxor.u32 %v1496, 2147483648
  %v1710 = vxor.u32 %v1500, 2147483648
  %v1711 = vxor.u32 %v1502, 2147483648
  %v1712 = vxor.u32 %v1504, 2147483648
  %v1713 = vxor.u32 %v1506, 2147483648
  %v1714 = vxor.u32 %v1510, 2147483648
  %v1715 = vxor.u32 %v1512, 2147483648
  %v1716 = vxor.u32 %v1514, 2147483648
  %v1717 = vxor.u32 %v1516, 2147483648
  %v1718 = vxor.u32 %v1520, 2147483648
  %v1719 = vxor.u32 %v1522, 2147483648
  %v1720 = vxor.u32 %v1524, 2147483648
  %v1721 = vxor.u32 %v1526, 2147483648
  %v1722 = vxor.u32 %v1530, 2147483648
  %v1723 = vxor.u32 %v1532, 2147483648
  %v1724 = vxor.u32 %v1534, 2147483648
  %v1725 = vxor.u32 %v1536, 2147483648
  %v1726 = vxor.u32 %v1540, 2147483648
  %v1727 = vxor.u32 %v1542, 2147483648
  %v1728 = vxor.u32 %v1544, 2147483648
  %v1729 = vxor.u32 %v1546, 2147483648
  %v1730 = vxor.u32 %v1550, 2147483648
  %v1731 = vxor.u32 %v1552, 2147483648
  %v1732 = vxor.u32 %v1554, 2147483648
  %v1733 = vxor.u32 %v1556, 2147483648
  %v1734 = vxor.u32 %v1560, 2147483648
  %v1735 = vxor.u32 %v1562, 2147483648
  %v1736 = vxor.u32 %v1564, 2147483648
  %v1737 = vxor.u32 %v1566, 2147483648
  %v1738 = vxor.u32 %v1570, 2147483648
  %v1739 = vxor.u32 %v1572, 2147483648
  %v1740 = vxor.u32 %v1574, 2147483648
  %v1741 = vxor.u32 %v1576, 2147483648
  %v1742 = vxor.u32 %v1580, 2147483648
  %v1743 = vxor.u32 %v1582, 2147483648
  %v1744 = vxor.u32 %v1584, 2147483648
  %v1745 = vxor.u32 %v1586, 2147483648
  %v1746 = vxor.u32 %v1590, 2147483648
  %v1747 = vxor.u32 %v1592, 2147483648
  %v1748 = vxor.u32 %v1594, 2147483648
  %v1749 = vxor.u32 %v1596, 2147483648
  %v1750 = vxor.u32 %v1600, 2147483648
  %v1751 = vxor.u32 %v1602, 2147483648
  %v1752 = vxor.u32 %v1604, 2147483648
  %v1753 = vxor.u32 %v1606, 2147483648
  %v1754 = vxor.u32 %v1610, 2147483648
  %v1755 = vxor.u32 %v1612, 2147483648
  %v1756 = vxor.u32 %v1614, 2147483648
  %v1757 = vxor.u32 %v1616, 2147483648
  %v1758 = vxor.u32 %v1620, 2147483648
  %v1759 = vxor.u32 %v1622, 2147483648
  %v1760 = vxor.u32 %v1624, 2147483648
  %v1761 = vxor.u32 %v1626, 2147483648
  %v1762 = vxor.u32 %v1630, 2147483648
  %v1763 = vxor.u32 %v1632, 2147483648
  %v1764 = vxor.u32 %v1634, 2147483648
  %v1765 = vxor.u32 %v1636, 2147483648
  %v1766 = vmul.f32 %v1638, 1.442695
  %v1767 = vpow.pop %v1766
  %v1768 = vmul.f32 %v1639, 1.442695
  %v1769 = vpow.pop %v1768
  %v1770 = vmul.f32 %v1640, 1.442695
  %v1771 = vpow.pop %v1770
  %v1772 = vmul.f32 %v1641, 1.442695
  %v1773 = vpow.pop %v1772
  %v1774 = vmul.f32 %v1642, 1.442695
  %v1775 = vpow.pop %v1774
  %v1776 = vmul.f32 %v1643, 1.442695
  %v1777 = vpow.pop %v1776
  %v1778 = vmul.f32 %v1644, 1.442695
  %v1779 = vpow.pop %v1778
  %v1780 = vmul.f32 %v1645, 1.442695
  %v1781 = vpow.pop %v1780
  %v1782 = vmul.f32 %v1646, 1.442695
  %v1783 = vpow.pop %v1782
  %v1784 = vmul.f32 %v1647, 1.442695
  %v1785 = vpow.pop %v1784
  %v1786 = vmul.f32 %v1648, 1.442695
  %v1787 = vpow.pop %v1786
  %v1788 = vmul.f32 %v1649, 1.442695
  %v1789 = vpow.pop %v1788
  %v1790 = vmul.f32 %v1650, 1.442695
  %v1791 = vpow.pop %v1790
  %v1792 = vmul.f32 %v1651, 1.442695
  %v1793 = vpow.pop %v1792
  %v1794 = vmul.f32 %v1652, 1.442695
  %v1795 = vpow.pop %v1794
  %v1796 = vmul.f32 %v1653, 1.442695
  %v1797 = vpow.pop %v1796
  %v1798 = vmul.f32 %v1654, 1.442695
  %v1799 = vpow.pop %v1798
  %v1800 = vmul.f32 %v1655, 1.442695
  %v1801 = vpow.pop %v1800
  %v1802 = vmul.f32 %v1656, 1.442695
  %v1803 = vpow.pop %v1802
  %v1804 = vmul.f32 %v1657, 1.442695
  %v1805 = vpow.pop %v1804
  %v1806 = vmul.f32 %v1658, 1.442695
  %v1807 = vpow.pop %v1806
  %v1808 = vmul.f32 %v1659, 1.442695
  %v1809 = vpow.pop %v1808
  %v1810 = vmul.f32 %v1660, 1.442695
  %v1811 = vpow.pop %v1810
  %v1812 = vmul.f32 %v1661, 1.442695
  %v1813 = vpow.pop %v1812
  %v1814 = vmul.f32 %v1662, 1.442695
  %v1815 = vpow.pop %v1814
  %v1816 = vmul.f32 %v1663, 1.442695
  %v1817 = vpow.pop %v1816
  %v1818 = vmul.f32 %v1664, 1.442695
  %v1819 = vpow.pop %v1818
  %v1820 = vmul.f32 %v1665, 1.442695
  %v1821 = vpow.pop %v1820
  %v1822 = vmul.f32 %v1666, 1.442695
  %v1823 = vpow.pop %v1822
  %v1824 = vmul.f32 %v1667, 1.442695
  %v1825 = vpow.pop %v1824
  %v1826 = vmul.f32 %v1668, 1.442695
  %v1827 = vpow.pop %v1826
  %v1828 = vmul.f32 %v1669, 1.442695
  %v1829 = vpow.pop %v1828
  %v1830 = vmul.f32 %v1670, 1.442695
  %v1831 = vpow.pop %v1830
  %v1832 = vmul.f32 %v1671, 1.442695
  %v1833 = vpow.pop %v1832
  %v1834 = vmul.f32 %v1672, 1.442695
  %v1835 = vpow.pop %v1834
  %v1836 = vmul.f32 %v1673, 1.442695
  %v1837 = vpow.pop %v1836
  %v1838 = vmul.f32 %v1674, 1.442695
  %v1839 = vpow.pop %v1838
  %v1840 = vmul.f32 %v1675, 1.442695
  %v1841 = vpow.pop %v1840
  %v1842 = vmul.f32 %v1676, 1.442695
  %v1843 = vpow.pop %v1842
  %v1844 = vmul.f32 %v1677, 1.442695
  %v1845 = vpow.pop %v1844
  %v1846 = vmul.f32 %v1678, 1.442695
  %v1847 = vpow.pop %v1846
  %v1848 = vmul.f32 %v1679, 1.442695
  %v1849 = vpow.pop %v1848
  %v1850 = vmul.f32 %v1680, 1.442695
  %v1851 = vpow.pop %v1850
  %v1852 = vmul.f32 %v1681, 1.442695
  %v1853 = vpow.pop %v1852
  %v1854 = vmul.f32 %v1682, 1.442695
  %v1855 = vpow.pop %v1854
  %v1856 = vmul.f32 %v1683, 1.442695
  %v1857 = vpow.pop %v1856
  %v1858 = vmul.f32 %v1684, 1.442695
  %v1859 = vpow.pop %v1858
  %v1860 = vmul.f32 %v1685, 1.442695
  %v1861 = vpow.pop %v1860
  %v1862 = vmul.f32 %v1686, 1.442695
  %v1863 = vpow.pop %v1862
  %v1864 = vmul.f32 %v1687, 1.442695
  %v1865 = vpow.pop %v1864
  %v1866 = vmul.f32 %v1688, 1.442695
  %v1867 = vpow.pop %v1866
  %v1868 = vmul.f32 %v1689, 1.442695
  %v1869 = vpow.pop %v1868
  %v1870 = vmul.f32 %v1690, 1.442695
  %v1871 = vpow.pop %v1870
  %v1872 = vmul.f32 %v1691, 1.442695
  %v1873 = vpow.pop %v1872
  %v1874 = vmul.f32 %v1692, 1.442695
  %v1875 = vpow.pop %v1874
  %v1876 = vmul.f32 %v1693, 1.442695
  %v1877 = vpow.pop %v1876
  %v1878 = vmul.f32 %v1694, 1.442695
  %v1879 = vpow.pop %v1878
  %v1880 = vmul.f32 %v1695, 1.442695
  %v1881 = vpow.pop %v1880
  %v1882 = vmul.f32 %v1696, 1.442695
  %v1883 = vpow.pop %v1882
  %v1884 = vmul.f32 %v1697, 1.442695
  %v1885 = vpow.pop %v1884
  %v1886 = vmul.f32 %v1698, 1.442695
  %v1887 = vpow.pop %v1886
  %v1888 = vmul.f32 %v1699, 1.442695
  %v1889 = vpow.pop %v1888
  %v1890 = vmul.f32 %v1700, 1.442695
  %v1891 = vpow.pop %v1890
  %v1892 = vmul.f32 %v1701, 1.442695
  %v1893 = vpow.pop %v1892
  %v1894 = vmul.f32 %v1702, 1.442695
  %v1895 = vpow.pop %v1894
  %v1896 = vmul.f32 %v1703, 1.442695
  %v1897 = vpow.pop %v1896
  %v1898 = vmul.f32 %v1704, 1.442695
  %v1899 = vpow.pop %v1898
  %v1900 = vmul.f32 %v1705, 1.442695
  %v1901 = vpow.pop %v1900
  %v1902 = vmul.f32 %v1706, 1.442695
  %v1903 = vpow.pop %v1902
  %v1904 = vmul.f32 %v1707, 1.442695
  %v1905 = vpow.pop %v1904
  %v1906 = vmul.f32 %v1708, 1.442695
  %v1907 = vpow.pop %v1906
  %v1908 = vmul.f32 %v1709, 1.442695
  %v1909 = vpow.pop %v1908
  %v1910 = vmul.f32 %v1710, 1.442695
  %v1911 = vpow.pop %v1910
  %v1912 = vmul.f32 %v1711, 1.442695
  %v1913 = vpow.pop %v1912
  %v1914 = vmul.f32 %v1712, 1.442695
  %v1915 = vpow.pop %v1914
  %v1916 = vmul.f32 %v1713, 1.442695
  %v1917 = vpow.pop %v1916
  %v1918 = vmul.f32 %v1714, 1.442695
  %v1919 = vpow.pop %v1918
  %v1920 = vmul.f32 %v1715, 1.442695
  %v1921 = vpow.pop %v1920
  %v1922 = vmul.f32 %v1716, 1.442695
  %v1923 = vpow.pop %v1922
  %v1924 = vmul.f32 %v1717, 1.442695
  %v1925 = vpow.pop %v1924
  %v1926 = vmul.f32 %v1718, 1.442695
  %v1927 = vpow.pop %v1926
  %v1928 = vmul.f32 %v1719, 1.442695
  %v1929 = vpow.pop %v1928
  %v1930 = vmul.f32 %v1720, 1.442695
  %v1931 = vpow.pop %v1930
  %v1932 = vmul.f32 %v1721, 1.442695
  %v1933 = vpow.pop %v1932
  %v1934 = vmul.f32 %v1722, 1.442695
  %v1935 = vpow.pop %v1934
  %v1936 = vmul.f32 %v1723, 1.442695
  %v1937 = vpow.pop %v1936
  %v1938 = vmul.f32 %v1724, 1.442695
  %v1939 = vpow.pop %v1938
  %v1940 = vmul.f32 %v1725, 1.442695
  %v1941 = vpow.pop %v1940
  %v1942 = vmul.f32 %v1726, 1.442695
  %v1943 = vpow.pop %v1942
  %v1944 = vmul.f32 %v1727, 1.442695
  %v1945 = vpow.pop %v1944
  %v1946 = vmul.f32 %v1728, 1.442695
  %v1947 = vpow.pop %v1946
  %v1948 = vmul.f32 %v1729, 1.442695
  %v1949 = vpow.pop %v1948
  %v1950 = vmul.f32 %v1730, 1.442695
  %v1951 = vpow.pop %v1950
  %v1952 = vmul.f32 %v1731, 1.442695
  %v1953 = vpow.pop %v1952
  %v1954 = vmul.f32 %v1732, 1.442695
  %v1955 = vpow.pop %v1954
  %v1956 = vmul.f32 %v1733, 1.442695
  %v1957 = vpow.pop %v1956
  %v1958 = vmul.f32 %v1734, 1.442695
  %v1959 = vpow.pop %v1958
  %v1960 = vmul.f32 %v1735, 1.442695
  %v1961 = vpow.pop %v1960
  %v1962 = vmul.f32 %v1736, 1.442695
  %v1963 = vpow.pop %v1962
  %v1964 = vmul.f32 %v1737, 1.442695
  %v1965 = vpow.pop %v1964
  %v1966 = vmul.f32 %v1738, 1.442695
  %v1967 = vpow.pop %v1966
  %v1968 = vmul.f32 %v1739, 1.442695
  %v1969 = vpow.pop %v1968
  %v1970 = vmul.f32 %v1740, 1.442695
  %v1971 = vpow.pop %v1970
  %v1972 = vmul.f32 %v1741, 1.442695
  %v1973 = vpow.pop %v1972
  %v1974 = vmul.f32 %v1742, 1.442695
  %v1975 = vpow.pop %v1974
  %v1976 = vmul.f32 %v1743, 1.442695
  %v1977 = vpow.pop %v1976
  %v1978 = vmul.f32 %v1744, 1.442695
  %v1979 = vpow.pop %v1978
  %v1980 = vmul.f32 %v1745, 1.442695
  %v1981 = vpow.pop %v1980
  %v1982 = vmul.f32 %v1746, 1.442695
  %v1983 = vpow.pop %v1982
  %v1984 = vmul.f32 %v1747, 1.442695
  %v1985 = vpow.pop %v1984
  %v1986 = vmul.f32 %v1748, 1.442695
  %v1987 = vpow.pop %v1986
  %v1988 = vmul.f32 %v1749, 1.442695
  %v1989 = vpow.pop %v1988
  %v1990 = vmul.f32 %v1750, 1.442695
  %v1991 = vpow.pop %v1990
  %v1992 = vmul.f32 %v1751, 1.442695
  %v1993 = vpow.pop %v1992
  %v1994 = vmul.f32 %v1752, 1.442695
  %v1995 = vpow.pop %v1994
  %v1996 = vmul.f32 %v1753, 1.442695
  %v1997 = vpow.pop %v1996
  %v1998 = vmul.f32 %v1754, 1.442695
  %v1999 = vpow.pop %v1998
  %v2000 = vmul.f32 %v1755, 1.442695
  %v2001 = vpow.pop %v2000
  %v2002 = vmul.f32 %v1756, 1.442695
  %v2003 = vpow.pop %v2002
  %v2004 = vmul.f32 %v1757, 1.442695
  %v2005 = vpow.pop %v2004
  %v2006 = vmul.f32 %v1758, 1.442695
  %v2007 = vpow.pop %v2006
  %v2008 = vmul.f32 %v1759, 1.442695
  %v2009 = vpow.pop %v2008
  %v2010 = vmul.f32 %v1760, 1.442695
  %v2011 = vpow.pop %v2010
  %v2012 = vmul.f32 %v1761, 1.442695
  %v2013 = vpow.pop %v2012
  %v2014 = vmul.f32 %v1762, 1.442695
  %v2015 = vpow.pop %v2014
  %v2016 = vmul.f32 %v1763, 1.442695
  %v2017 = vpow.pop %v2016
  %v2018 = vmul.f32 %v1764, 1.442695
  %v2019 = vpow.pop %v2018
  %v2020 = vmul.f32 %v1765, 1.442695
  %v2021 = vpow.pop %v2020
  %v2022 = vadd.f32 %v1767, 1.0
  %v2023 = vadd.f32 %v1769, 1.0
  %v2024 = vadd.f32 %v1771, 1.0
  %v2025 = vadd.f32 %v1773, 1.0
  %v2026 = vadd.f32 %v1775, 1.0
  %v2027 = vadd.f32 %v1777, 1.0
  %v2028 = vadd.f32 %v1779, 1.0
  %v2029 = vadd.f32 %v1781, 1.0
  %v2030 = vadd.f32 %v1783, 1.0
  %v2031 = vadd.f32 %v1785, 1.0
  %v2032 = vadd.f32 %v1787, 1.0
  %v2033 = vadd.f32 %v1789, 1.0
  %v2034 = vadd.f32 %v1791, 1.0
  %v2035 = vadd.f32 %v1793, 1.0
  %v2036 = vadd.f32 %v1795, 1.0
  %v2037 = vadd.f32 %v1797, 1.0
  %v2038 = vadd.f32 %v1799, 1.0
  %v2039 = vadd.f32 %v1801, 1.0
  %v2040 = vadd.f32 %v1803, 1.0
  %v2041 = vadd.f32 %v1805, 1.0
  %v2042 = vadd.f32 %v1807, 1.0
  %v2043 = vadd.f32 %v1809, 1.0
  %v2044 = vadd.f32 %v1811, 1.0
  %v2045 = vadd.f32 %v1813, 1.0
  %v2046 = vadd.f32 %v1815, 1.0
  %v2047 = vadd.f32 %v1817, 1.0
  %v2048 = vadd.f32 %v1819, 1.0
  %v2049 = vadd.f32 %v1821, 1.0
  %v2050 = vadd.f32 %v1823, 1.0
  %v2051 = vadd.f32 %v1825, 1.0
  %v2052 = vadd.f32 %v1827, 1.0
  %v2053 = vadd.f32 %v1829, 1.0
  %v2054 = vadd.f32 %v1831, 1.0
  %v2055 = vadd.f32 %v1833, 1.0
  %v2056 = vadd.f32 %v1835, 1.0
  %v2057 = vadd.f32 %v1837, 1.0
  %v2058 = vadd.f32 %v1839, 1.0
  %v2059 = vadd.f32 %v1841, 1.0
  %v2060 = vadd.f32 %v1843, 1.0
  %v2061 = vadd.f32 %v1845, 1.0
  %v2062 = vadd.f32 %v1847, 1.0
  %v2063 = vadd.f32 %v1849, 1.0
  %v2064 = vadd.f32 %v1851, 1.0
  %v2065 = vadd.f32 %v1853, 1.0
  %v2066 = vadd.f32 %v1855, 1.0
  %v2067 = vadd.f32 %v1857, 1.0
  %v2068 = vadd.f32 %v1859, 1.0
  %v2069 = vadd.f32 %v1861, 1.0
  %v2070 = vadd.f32 %v1863, 1.0
  %v2071 = vadd.f32 %v1865, 1.0
  %v2072 = vadd.f32 %v1867, 1.0
  %v2073 = vadd.f32 %v1869, 1.0
  %v2074 = vadd.f32 %v1871, 1.0
  %v2075 = vadd.f32 %v1873, 1.0
  %v2076 = vadd.f32 %v1875, 1.0
  %v2077 = vadd.f32 %v1877, 1.0
  %v2078 = vadd.f32 %v1879, 1.0
  %v2079 = vadd.f32 %v1881, 1.0
  %v2080 = vadd.f32 %v1883, 1.0
  %v2081 = vadd.f32 %v1885, 1.0
  %v2082 = vadd.f32 %v1887, 1.0
  %v2083 = vadd.f32 %v1889, 1.0
  %v2084 = vadd.f32 %v1891, 1.0
  %v2085 = vadd.f32 %v1893, 1.0
  %v2086 = vadd.f32 %v1895, 1.0
  %v2087 = vadd.f32 %v1897, 1.0
  %v2088 = vadd.f32 %v1899, 1.0
  %v2089 = vadd.f32 %v1901, 1.0
  %v2090 = vadd.f32 %v1903, 1.0
  %v2091 = vadd.f32 %v1905, 1.0
  %v2092 = vadd.f32 %v1907, 1.0
  %v2093 = vadd.f32 %v1909, 1.0
  %v2094 = vadd.f32 %v1911, 1.0
  %v2095 = vadd.f32 %v1913, 1.0
  %v2096 = vadd.f32 %v1915, 1.0
  %v2097 = vadd.f32 %v1917, 1.0
  %v2098 = vadd.f32 %v1919, 1.0
  %v2099 = vadd.f32 %v1921, 1.0
  %v2100 = vadd.f32 %v1923, 1.0
  %v2101 = vadd.f32 %v1925, 1.0
  %v2102 = vadd.f32 %v1927, 1.0
  %v2103 = vadd.f32 %v1929, 1.0
  %v2104 = vadd.f32 %v1931, 1.0
  %v2105 = vadd.f32 %v1933, 1.0
  %v2106 = vadd.f32 %v1935, 1.0
  %v2107 = vadd.f32 %v1937, 1.0
  %v2108 = vadd.f32 %v1939, 1.0
  %v2109 = vadd.f32 %v1941, 1.0
  %v2110 = vadd.f32 %v1943, 1.0
  %v2111 = vadd.f32 %v1945, 1.0
  %v2112 = vadd.f32 %v1947, 1.0
  %v2113 = vadd.f32 %v1949, 1.0
  %v2114 = vadd.f32 %v1951, 1.0
  %v2115 = vadd.f32 %v1953, 1.0
  %v2116 = vadd.f32 %v1955, 1.0
  %v2117 = vadd.f32 %v1957, 1.0
  %v2118 = vadd.f32 %v1959, 1.0
  %v2119 = vadd.f32 %v1961, 1.0
  %v2120 = vadd.f32 %v1963, 1.0
  %v2121 = vadd.f32 %v1965, 1.0
  %v2122 = vadd.f32 %v1967, 1.0
  %v2123 = vadd.f32 %v1969, 1.0
  %v2124 = vadd.f32 %v1971, 1.0
  %v2125 = vadd.f32 %v1973, 1.0
  %v2126 = vadd.f32 %v1975, 1.0
  %v2127 = vadd.f32 %v1977, 1.0
  %v2128 = vadd.f32 %v1979, 1.0
  %v2129 = vadd.f32 %v1981, 1.0
  %v2130 = vadd.f32 %v1983, 1.0
  %v2131 = vadd.f32 %v1985, 1.0
  %v2132 = vadd.f32 %v1987, 1.0
  %v2133 = vadd.f32 %v1989, 1.0
  %v2134 = vadd.f32 %v1991, 1.0
  %v2135 = vadd.f32 %v1993, 1.0
  %v2136 = vadd.f32 %v1995, 1.0
  %v2137 = vadd.f32 %v1997, 1.0
  %v2138 = vadd.f32 %v1999, 1.0
  %v2139 = vadd.f32 %v2001, 1.0
  %v2140 = vadd.f32 %v2003, 1.0
  %v2141 = vadd.f32 %v2005, 1.0
  %v2142 = vadd.f32 %v2007, 1.0
  %v2143 = vadd.f32 %v2009, 1.0
  %v2144 = vadd.f32 %v2011, 1.0
  %v2145 = vadd.f32 %v2013, 1.0
  %v2146 = vadd.f32 %v2015, 1.0
  %v2147 = vadd.f32 %v2017, 1.0
  %v2148 = vadd.f32 %v2019, 1.0
  %v2149 = vadd.f32 %v2021, 1.0
  %v2150 = vrcp.pop %v2022
  %v2151 = vmul.f32 1.0, %v2150
  %v2152 = vrcp.pop %v2023
  %v2153 = vmul.f32 1.0, %v2152
  %v2154 = vrcp.pop %v2024
  %v2155 = vmul.f32 1.0, %v2154
  %v2156 = vrcp.pop %v2025
  %v2157 = vmul.f32 1.0, %v2156
  %v2158 = vrcp.pop %v2026
  %v2159 = vmul.f32 1.0, %v2158
  %v2160 = vrcp.pop %v2027
  %v2161 = vmul.f32 1.0, %v2160
  %v2162 = vrcp.pop %v2028
  %v2163 = vmul.f32 1.0, %v2162
  %v2164 = vrcp.pop %v2029
  %v2165 = vmul.f32 1.0, %v2164
  %v2166 = vrcp.pop %v2030
  %v2167 = vmul.f32 1.0, %v2166
  %v2168 = vrcp.pop %v2031
  %v2169 = vmul.f32 1.0, %v2168
  %v2170 = vrcp.pop %v2032
  %v2171 = vmul.f32 1.0, %v2170
  %v2172 = vrcp.pop %v2033
  %v2173 = vmul.f32 1.0, %v2172
  %v2174 = vrcp.pop %v2034
  %v2175 = vmul.f32 1.0, %v2174
  %v2176 = vrcp.pop %v2035
  %v2177 = vmul.f32 1.0, %v2176
  %v2178 = vrcp.pop %v2036
  %v2179 = vmul.f32 1.0, %v2178
  %v2180 = vrcp.pop %v2037
  %v2181 = vmul.f32 1.0, %v2180
  %v2182 = vrcp.pop %v2038
  %v2183 = vmul.f32 1.0, %v2182
  %v2184 = vrcp.pop %v2039
  %v2185 = vmul.f32 1.0, %v2184
  %v2186 = vrcp.pop %v2040
  %v2187 = vmul.f32 1.0, %v2186
  %v2188 = vrcp.pop %v2041
  %v2189 = vmul.f32 1.0, %v2188
  %v2190 = vrcp.pop %v2042
  %v2191 = vmul.f32 1.0, %v2190
  %v2192 = vrcp.pop %v2043
  %v2193 = vmul.f32 1.0, %v2192
  %v2194 = vrcp.pop %v2044
  %v2195 = vmul.f32 1.0, %v2194
  %v2196 = vrcp.pop %v2045
  %v2197 = vmul.f32 1.0, %v2196
  %v2198 = vrcp.pop %v2046
  %v2199 = vmul.f32 1.0, %v2198
  %v2200 = vrcp.pop %v2047
  %v2201 = vmul.f32 1.0, %v2200
  %v2202 = vrcp.pop %v2048
  %v2203 = vmul.f32 1.0, %v2202
  %v2204 = vrcp.pop %v2049
  %v2205 = vmul.f32 1.0, %v2204
  %v2206 = vrcp.pop %v2050
  %v2207 = vmul.f32 1.0, %v2206
  %v2208 = vrcp.pop %v2051
  %v2209 = vmul.f32 1.0, %v2208
  %v2210 = vrcp.pop %v2052
  %v2211 = vmul.f32 1.0, %v2210
  %v2212 = vrcp.pop %v2053
  %v2213 = vmul.f32 1.0, %v2212
  %v2214 = vrcp.pop %v2054
  %v2215 = vmul.f32 1.0, %v2214
  %v2216 = vrcp.pop %v2055
  %v2217 = vmul.f32 1.0, %v2216
  %v2218 = vrcp.pop %v2056
  %v2219 = vmul.f32 1.0, %v2218
  %v2220 = vrcp.pop %v2057
  %v2221 = vmul.f32 1.0, %v2220
  %v2222 = vrcp.pop %v2058
  %v2223 = vmul.f32 1.0, %v2222
  %v2224 = vrcp.pop %v2059
  %v2225 = vmul.f32 1.0, %v2224
  %v2226 = vrcp.pop %v2060
  %v2227 = vmul.f32 1.0, %v2226
  %v2228 = vrcp.pop %v2061
  %v2229 = vmul.f32 1.0, %v2228
  %v2230 = vrcp.pop %v2062
  %v2231 = vmul.f32 1.0, %v2230
  %v2232 = vrcp.pop %v2063
  %v2233 = vmul.f32 1.0, %v2232
  %v2234 = vrcp.pop %v2064
  %v2235 = vmul.f32 1.0, %v2234
  %v2236 = vrcp.pop %v2065
  %v2237 = vmul.f32 1.0, %v2236
  %v2238 = vrcp.pop %v2066
  %v2239 = vmul.f32 1.0, %v2238
  %v2240 = vrcp.pop %v2067
  %v2241 = vmul.f32 1.0, %v2240
  %v2242 = vrcp.pop %v2068
  %v2243 = vmul.f32 1.0, %v2242
  %v2244 = vrcp.pop %v2069
  %v2245 = vmul.f32 1.0, %v2244
  %v2246 = vrcp.pop %v2070
  %v2247 = vmul.f32 1.0, %v2246
  %v2248 = vrcp.pop %v2071
  %v2249 = vmul.f32 1.0, %v2248
  %v2250 = vrcp.pop %v2072
  %v2251 = vmul.f32 1.0, %v2250
  %v2252 = vrcp.pop %v2073
  %v2253 = vmul.f32 1.0, %v2252
  %v2254 = vrcp.pop %v2074
  %v2255 = vmul.f32 1.0, %v2254
  %v2256 = vrcp.pop %v2075
  %v2257 = vmul.f32 1.0, %v2256
  %v2258 = vrcp.pop %v2076
  %v2259 = vmul.f32 1.0, %v2258
  %v2260 = vrcp.pop %v2077
  %v2261 = vmul.f32 1.0, %v2260
  %v2262 = vrcp.pop %v2078
  %v2263 = vmul.f32 1.0, %v2262
  %v2264 = vrcp.pop %v2079
  %v2265 = vmul.f32 1.0, %v2264
  %v2266 = vrcp.pop %v2080
  %v2267 = vmul.f32 1.0, %v2266
  %v2268 = vrcp.pop %v2081
  %v2269 = vmul.f32 1.0, %v2268
  %v2270 = vrcp.pop %v2082
  %v2271 = vmul.f32 1.0, %v2270
  %v2272 = vrcp.pop %v2083
  %v2273 = vmul.f32 1.0, %v2272
  %v2274 = vrcp.pop %v2084
  %v2275 = vmul.f32 1.0, %v2274
  %v2276 = vrcp.pop %v2085
  %v2277 = vmul.f32 1.0, %v2276
  %v2278 = vrcp.pop %v2086
  %v2279 = vmul.f32 1.0, %v2278
  %v2280 = vrcp.pop %v2087
  %v2281 = vmul.f32 1.0, %v2280
  %v2282 = vrcp.pop %v2088
  %v2283 = vmul.f32 1.0, %v2282
  %v2284 = vrcp.pop %v2089
  %v2285 = vmul.f32 1.0, %v2284
  %v2286 = vrcp.pop %v2090
  %v2287 = vmul.f32 1.0, %v2286
  %v2288 = vrcp.pop %v2091
  %v2289 = vmul.f32 1.0, %v2288
  %v2290 = vrcp.pop %v2092
  %v2291 = vmul.f32 1.0, %v2290
  %v2292 = vrcp.pop %v2093
  %v2293 = vmul.f32 1.0, %v2292
  %v2294 = vrcp.pop %v2094
  %v2295 = vmul.f32 1.0, %v2294
  %v2296 = vrcp.pop %v2095
  %v2297 = vmul.f32 1.0, %v2296
  %v2298 = vrcp.pop %v2096
  %v2299 = vmul.f32 1.0, %v2298
  %v2300 = vrcp.pop %v2097
  %v2301 = vmul.f32 1.0, %v2300
  %v2302 = vrcp.pop %v2098
  %v2303 = vmul.f32 1.0, %v2302
  %v2304 = vrcp.pop %v2099
  %v2305 = vmul.f32 1.0, %v2304
  %v2306 = vrcp.pop %v2100
  %v2307 = vmul.f32 1.0, %v2306
  %v2308 = vrcp.pop %v2101
  %v2309 = vmul.f32 1.0, %v2308
  %v2310 = vrcp.pop %v2102
  %v2311 = vmul.f32 1.0, %v2310
  %v2312 = vrcp.pop %v2103
  %v2313 = vmul.f32 1.0, %v2312
  %v2314 = vrcp.pop %v2104
  %v2315 = vmul.f32 1.0, %v2314
  %v2316 = vrcp.pop %v2105
  %v2317 = vmul.f32 1.0, %v2316
  %v2318 = vrcp.pop %v2106
  %v2319 = vmul.f32 1.0, %v2318
  %v2320 = vrcp.pop %v2107
  %v2321 = vmul.f32 1.0, %v2320
  %v2322 = vrcp.pop %v2108
  %v2323 = vmul.f32 1.0, %v2322
  %v2324 = vrcp.pop %v2109
  %v2325 = vmul.f32 1.0, %v2324
  %v2326 = vrcp.pop %v2110
  %v2327 = vmul.f32 1.0, %v2326
  %v2328 = vrcp.pop %v2111
  %v2329 = vmul.f32 1.0, %v2328
  %v2330 = vrcp.pop %v2112
  %v2331 = vmul.f32 1.0, %v2330
  %v2332 = vrcp.pop %v2113
  %v2333 = vmul.f32 1.0, %v2332
  %v2334 = vrcp.pop %v2114
  %v2335 = vmul.f32 1.0, %v2334
  %v2336 = vrcp.pop %v2115
  %v2337 = vmul.f32 1.0, %v2336
  %v2338 = vrcp.pop %v2116
  %v2339 = vmul.f32 1.0, %v2338
  %v2340 = vrcp.pop %v2117
  %v2341 = vmul.f32 1.0, %v2340
  %v2342 = vrcp.pop %v2118
  %v2343 = vmul.f32 1.0, %v2342
  %v2344 = vrcp.pop %v2119
  %v2345 = vmul.f32 1.0, %v2344
  %v2346 = vrcp.pop %v2120
  %v2347 = vmul.f32 1.0, %v2346
  %v2348 = vrcp.pop %v2121
  %v2349 = vmul.f32 1.0, %v2348
  %v2350 = vrcp.pop %v2122
  %v2351 = vmul.f32 1.0, %v2350
  %v2352 = vrcp.pop %v2123
  %v2353 = vmul.f32 1.0, %v2352
  %v2354 = vrcp.pop %v2124
  %v2355 = vmul.f32 1.0, %v2354
  %v2356 = vrcp.pop %v2125
  %v2357 = vmul.f32 1.0, %v2356
  %v2358 = vrcp.pop %v2126
  %v2359 = vmul.f32 1.0, %v2358
  %v2360 = vrcp.pop %v2127
  %v2361 = vmul.f32 1.0, %v2360
  %v2362 = vrcp.pop %v2128
  %v2363 = vmul.f32 1.0, %v2362
  %v2364 = vrcp.pop %v2129
  %v2365 = vmul.f32 1.0, %v2364
  %v2366 = vrcp.pop %v2130
  %v2367 = vmul.f32 1.0, %v2366
  %v2368 = vrcp.pop %v2131
  %v2369 = vmul.f32 1.0, %v2368
  %v2370 = vrcp.pop %v2132
  %v2371 = vmul.f32 1.0, %v2370
  %v2372 = vrcp.pop %v2133
  %v2373 = vmul.f32 1.0, %v2372
  %v2374 = vrcp.pop %v2134
  %v2375 = vmul.f32 1.0, %v2374
  %v2376 = vrcp.pop %v2135
  %v2377 = vmul.f32 1.0, %v2376
  %v2378 = vrcp.pop %v2136
  %v2379 = vmul.f32 1.0, %v2378
  %v2380 = vrcp.pop %v2137
  %v2381 = vmul.f32 1.0, %v2380
  %v2382 = vrcp.pop %v2138
  %v2383 = vmul.f32 1.0, %v2382
  %v2384 = vrcp.pop %v2139
  %v2385 = vmul.f32 1.0, %v2384
  %v2386 = vrcp.pop %v2140
  %v2387 = vmul.f32 1.0, %v2386
  %v2388 = vrcp.pop %v2141
  %v2389 = vmul.f32 1.0, %v2388
  %v2390 = vrcp.pop %v2142
  %v2391 = vmul.f32 1.0, %v2390
  %v2392 = vrcp.pop %v2143
  %v2393 = vmul.f32 1.0, %v2392
  %v2394 = vrcp.pop %v2144
  %v2395 = vmul.f32 1.0, %v2394
  %v2396 = vrcp.pop %v2145
  %v2397 = vmul.f32 1.0, %v2396
  %v2398 = vrcp.pop %v2146
  %v2399 = vmul.f32 1.0, %v2398
  %v2400 = vrcp.pop %v2147
  %v2401 = vmul.f32 1.0, %v2400
  %v2402 = vrcp.pop %v2148
  %v2403 = vmul.f32 1.0, %v2402
  %v2404 = vrcp.pop %v2149
  %v2405 = vmul.f32 1.0, %v2404
  %v2406 = vmul.f32 %v1320, %v2151
  %v2407 = vmul.f32 %v1322, %v2153
  %v2408 = vmul.f32 %v1324, %v2155
  %v2409 = vmul.f32 %v1326, %v2157
  %v2410 = vmul.f32 %v1330, %v2159
  %v2411 = vmul.f32 %v1332, %v2161
  %v2412 = vmul.f32 %v1334, %v2163
  %v2413 = vmul.f32 %v1336, %v2165
  %v2414 = vmul.f32 %v1340, %v2167
  %v2415 = vmul.f32 %v1342, %v2169
  %v2416 = vmul.f32 %v1344, %v2171
  %v2417 = vmul.f32 %v1346, %v2173
  %v2418 = vmul.f32 %v1350, %v2175
  %v2419 = vmul.f32 %v1352, %v2177
  %v2420 = vmul.f32 %v1354, %v2179
  %v2421 = vmul.f32 %v1356, %v2181
  %v2422 = vmul.f32 %v1360, %v2183
  %v2423 = vmul.f32 %v1362, %v2185
  %v2424 = vmul.f32 %v1364, %v2187
  %v2425 = vmul.f32 %v1366, %v2189
  %v2426 = vmul.f32 %v1370, %v2191
  %v2427 = vmul.f32 %v1372, %v2193
  %v2428 = vmul.f32 %v1374, %v2195
  %v2429 = vmul.f32 %v1376, %v2197
  %v2430 = vmul.f32 %v1380, %v2199
  %v2431 = vmul.f32 %v1382, %v2201
  %v2432 = vmul.f32 %v1384, %v2203
  %v2433 = vmul.f32 %v1386, %v2205
  %v2434 = vmul.f32 %v1390, %v2207
  %v2435 = vmul.f32 %v1392, %v2209
  %v2436 = vmul.f32 %v1394, %v2211
  %v2437 = vmul.f32 %v1396, %v2213
  %v2438 = vmul.f32 %v1400, %v2215
  %v2439 = vmul.f32 %v1402, %v2217
  %v2440 = vmul.f32 %v1404, %v2219
  %v2441 = vmul.f32 %v1406, %v2221
  %v2442 = vmul.f32 %v1410, %v2223
  %v2443 = vmul.f32 %v1412, %v2225
  %v2444 = vmul.f32 %v1414, %v2227
  %v2445 = vmul.f32 %v1416, %v2229
  %v2446 = vmul.f32 %v1420, %v2231
  %v2447 = vmul.f32 %v1422, %v2233
  %v2448 = vmul.f32 %v1424, %v2235
  %v2449 = vmul.f32 %v1426, %v2237
  %v2450 = vmul.f32 %v1430, %v2239
  %v2451 = vmul.f32 %v1432, %v2241
  %v2452 = vmul.f32 %v1434, %v2243
  %v2453 = vmul.f32 %v1436, %v2245
  %v2454 = vmul.f32 %v1440, %v2247
  %v2455 = vmul.f32 %v1442, %v2249
  %v2456 = vmul.f32 %v1444, %v2251
  %v2457 = vmul.f32 %v1446, %v2253
  %v2458 = vmul.f32 %v1450, %v2255
  %v2459 = vmul.f32 %v1452, %v2257
  %v2460 = vmul.f32 %v1454, %v2259
  %v2461 = vmul.f32 %v1456, %v2261
  %v2462 = vmul.f32 %v1460, %v2263
  %v2463 = vmul.f32 %v1462, %v2265
  %v2464 = vmul.f32 %v1464, %v2267
  %v2465 = vmul.f32 %v1466, %v2269
  %v2466 = vmul.f32 %v1470, %v2271
  %v2467 = vmul.f32 %v1472, %v2273
  %v2468 = vmul.f32 %v1474, %v2275
  %v2469 = vmul.f32 %v1476, %v2277
  %v2470 = vmul.f32 %v1480, %v2279
  %v2471 = vmul.f32 %v1482, %v2281
  %v2472 = vmul.f32 %v1484, %v2283
  %v2473 = vmul.f32 %v1486, %v2285
  %v2474 = vmul.f32 %v1490, %v2287
  %v2475 = vmul.f32 %v1492, %v2289
  %v2476 = vmul.f32 %v1494, %v2291
  %v2477 = vmul.f32 %v1496, %v2293
  %v2478 = vmul.f32 %v1500, %v2295
  %v2479 = vmul.f32 %v1502, %v2297
  %v2480 = vmul.f32 %v1504, %v2299
  %v2481 = vmul.f32 %v1506, %v2301
  %v2482 = vmul.f32 %v1510, %v2303
  %v2483 = vmul.f32 %v1512, %v2305
  %v2484 = vmul.f32 %v1514, %v2307
  %v2485 = vmul.f32 %v1516, %v2309
  %v2486 = vmul.f32 %v1520, %v2311
  %v2487 = vmul.f32 %v1522, %v2313
  %v2488 = vmul.f32 %v1524, %v2315
  %v2489 = vmul.f32 %v1526, %v2317
  %v2490 = vmul.f32 %v1530, %v2319
  %v2491 = vmul.f32 %v1532, %v2321
  %v2492 = vmul.f32 %v1534, %v2323
  %v2493 = vmul.f32 %v1536, %v2325
  %v2494 = vmul.f32 %v1540, %v2327
  %v2495 = vmul.f32 %v1542, %v2329
  %v2496 = vmul.f32 %v1544, %v2331
  %v2497 = vmul.f32 %v1546, %v2333
  %v2498 = vmul.f32 %v1550, %v2335
  %v2499 = vmul.f32 %v1552, %v2337
  %v2500 = vmul.f32 %v1554, %v2339
  %v2501 = vmul.f32 %v1556, %v2341
  %v2502 = vmul.f32 %v1560, %v2343
  %v2503 = vmul.f32 %v1562, %v2345
  %v2504 = vmul.f32 %v1564, %v2347
  %v2505 = vmul.f32 %v1566, %v2349
  %v2506 = vmul.f32 %v1570, %v2351
  %v2507 = vmul.f32 %v1572, %v2353
  %v2508 = vmul.f32 %v1574, %v2355
  %v2509 = vmul.f32 %v1576, %v2357
  %v2510 = vmul.f32 %v1580, %v2359
  %v2511 = vmul.f32 %v1582, %v2361
  %v2512 = vmul.f32 %v1584, %v2363
  %v2513 = vmul.f32 %v1586, %v2365
  %v2514 = vmul.f32 %v1590, %v2367
  %v2515 = vmul.f32 %v1592, %v2369
  %v2516 = vmul.f32 %v1594, %v2371
  %v2517 = vmul.f32 %v1596, %v2373
  %v2518 = vmul.f32 %v1600, %v2375
  %v2519 = vmul.f32 %v1602, %v2377
  %v2520 = vmul.f32 %v1604, %v2379
  %v2521 = vmul.f32 %v1606, %v2381
  %v2522 = vmul.f32 %v1610, %v2383
  %v2523 = vmul.f32 %v1612, %v2385
  %v2524 = vmul.f32 %v1614, %v2387
  %v2525 = vmul.f32 %v1616, %v2389
  %v2526 = vmul.f32 %v1620, %v2391
  %v2527 = vmul.f32 %v1622, %v2393
  %v2528 = vmul.f32 %v1624, %v2395
  %v2529 = vmul.f32 %v1626, %v2397
  %v2530 = vmul.f32 %v1630, %v2399
  %v2531 = vmul.f32 %v1632, %v2401
  %v2532 = vmul.f32 %v1634, %v2403
  %v2533 = vmul.f32 %v1636, %v2405
  %v2534 = vpack.c.bf16 %v2408, %v2406
  %v2535 = vpack.c.bf16 %v2409, %v2407
  %v2536 = vpack.c.bf16 %v2412, %v2410
  %v2537 = vpack.c.bf16 %v2413, %v2411
  %v2538 = vpack.c.bf16 %v2416, %v2414
  %v2539 = vpack.c.bf16 %v2417, %v2415
  %v2540 = vpack.c.bf16 %v2420, %v2418
  %v2541 = vpack.c.bf16 %v2421, %v2419
  %v2542 = vpack.c.bf16 %v2424, %v2422
  %v2543 = vpack.c.bf16 %v2425, %v2423
  %v2544 = vpack.c.bf16 %v2428, %v2426
  %v2545 = vpack.c.bf16 %v2429, %v2427
  %v2546 = vpack.c.bf16 %v2432, %v2430
  %v2547 = vpack.c.bf16 %v2433, %v2431
  %v2548 = vpack.c.bf16 %v2436, %v2434
  %v2549 = vpack.c.bf16 %v2437, %v2435
  %v2550 = vpack.c.bf16 %v2440, %v2438
  %v2551 = vpack.c.bf16 %v2441, %v2439
  %v2552 = vpack.c.bf16 %v2444, %v2442
  %v2553 = vpack.c.bf16 %v2445, %v2443
  %v2554 = vpack.c.bf16 %v2448, %v2446
  %v2555 = vpack.c.bf16 %v2449, %v2447
  %v2556 = vpack.c.bf16 %v2452, %v2450
  %v2557 = vpack.c.bf16 %v2453, %v2451
  %v2558 = vpack.c.bf16 %v2456, %v2454
  %v2559 = vpack.c.bf16 %v2457, %v2455
  %v2560 = vpack.c.bf16 %v2460, %v2458
  %v2561 = vpack.c.bf16 %v2461, %v2459
  %v2562 = vpack.c.bf16 %v2464, %v2462
  %v2563 = vpack.c.bf16 %v2465, %v2463
  %v2564 = vpack.c.bf16 %v2468, %v2466
  %v2565 = vpack.c.bf16 %v2469, %v2467
  %v2566 = vpack.c.bf16 %v2472, %v2470
  %v2567 = vpack.c.bf16 %v2473, %v2471
  %v2568 = vpack.c.bf16 %v2476, %v2474
  %v2569 = vpack.c.bf16 %v2477, %v2475
  %v2570 = vpack.c.bf16 %v2480, %v2478
  %v2571 = vpack.c.bf16 %v2481, %v2479
  %v2572 = vpack.c.bf16 %v2484, %v2482
  %v2573 = vpack.c.bf16 %v2485, %v2483
  %v2574 = vpack.c.bf16 %v2488, %v2486
  %v2575 = vpack.c.bf16 %v2489, %v2487
  %v2576 = vpack.c.bf16 %v2492, %v2490
  %v2577 = vpack.c.bf16 %v2493, %v2491
  %v2578 = vpack.c.bf16 %v2496, %v2494
  %v2579 = vpack.c.bf16 %v2497, %v2495
  %v2580 = vpack.c.bf16 %v2500, %v2498
  %v2581 = vpack.c.bf16 %v2501, %v2499
  %v2582 = vpack.c.bf16 %v2504, %v2502
  %v2583 = vpack.c.bf16 %v2505, %v2503
  %v2584 = vpack.c.bf16 %v2508, %v2506
  %v2585 = vpack.c.bf16 %v2509, %v2507
  %v2586 = vpack.c.bf16 %v2512, %v2510
  %v2587 = vpack.c.bf16 %v2513, %v2511
  %v2588 = vpack.c.bf16 %v2516, %v2514
  %v2589 = vpack.c.bf16 %v2517, %v2515
  %v2590 = vpack.c.bf16 %v2520, %v2518
  %v2591 = vpack.c.bf16 %v2521, %v2519
  %v2592 = vpack.c.bf16 %v2524, %v2522
  %v2593 = vpack.c.bf16 %v2525, %v2523
  %v2594 = vpack.c.bf16 %v2528, %v2526
  %v2595 = vpack.c.bf16 %v2529, %v2527
  %v2596 = vpack.c.bf16 %v2532, %v2530
  %v2597 = vpack.c.bf16 %v2533, %v2531
  %v2662 = vunpack.c.l.b16 %v2534
  %v2663 = vunpack.c.l.b16 %v2535
  %v2664 = vunpack.c.h.b16 %v2534
  %v2665 = vunpack.c.h.b16 %v2535
  %v2666 = vunpack.c.l.b16 %v2536
  %v2667 = vunpack.c.l.b16 %v2537
  %v2668 = vunpack.c.h.b16 %v2536
  %v2669 = vunpack.c.h.b16 %v2537
  %v2670 = vunpack.c.l.b16 %v2538
  %v2671 = vunpack.c.l.b16 %v2539
  %v2672 = vunpack.c.h.b16 %v2538
  %v2673 = vunpack.c.h.b16 %v2539
  %v2674 = vunpack.c.l.b16 %v2540
  %v2675 = vunpack.c.l.b16 %v2541
  %v2676 = vunpack.c.h.b16 %v2540
  %v2677 = vunpack.c.h.b16 %v2541
  %v2678 = vunpack.c.l.b16 %v2542
  %v2679 = vunpack.c.l.b16 %v2543
  %v2680 = vunpack.c.h.b16 %v2542
  %v2681 = vunpack.c.h.b16 %v2543
  %v2682 = vunpack.c.l.b16 %v2544
  %v2683 = vunpack.c.l.b16 %v2545
  %v2684 = vunpack.c.h.b16 %v2544
  %v2685 = vunpack.c.h.b16 %v2545
  %v2686 = vunpack.c.l.b16 %v2546
  %v2687 = vunpack.c.l.b16 %v2547
  %v2688 = vunpack.c.h.b16 %v2546
  %v2689 = vunpack.c.h.b16 %v2547
  %v2690 = vunpack.c.l.b16 %v2548
  %v2691 = vunpack.c.l.b16 %v2549
  %v2692 = vunpack.c.h.b16 %v2548
  %v2693 = vunpack.c.h.b16 %v2549
  %v2694 = vunpack.c.l.b16 %v2550
  %v2695 = vunpack.c.l.b16 %v2551
  %v2696 = vunpack.c.h.b16 %v2550
  %v2697 = vunpack.c.h.b16 %v2551
  %v2698 = vunpack.c.l.b16 %v2552
  %v2699 = vunpack.c.l.b16 %v2553
  %v2700 = vunpack.c.h.b16 %v2552
  %v2701 = vunpack.c.h.b16 %v2553
  %v2702 = vunpack.c.l.b16 %v2554
  %v2703 = vunpack.c.l.b16 %v2555
  %v2704 = vunpack.c.h.b16 %v2554
  %v2705 = vunpack.c.h.b16 %v2555
  %v2706 = vunpack.c.l.b16 %v2556
  %v2707 = vunpack.c.l.b16 %v2557
  %v2708 = vunpack.c.h.b16 %v2556
  %v2709 = vunpack.c.h.b16 %v2557
  %v2710 = vunpack.c.l.b16 %v2558
  %v2711 = vunpack.c.l.b16 %v2559
  %v2712 = vunpack.c.h.b16 %v2558
  %v2713 = vunpack.c.h.b16 %v2559
  %v2714 = vunpack.c.l.b16 %v2560
  %v2715 = vunpack.c.l.b16 %v2561
  %v2716 = vunpack.c.h.b16 %v2560
  %v2717 = vunpack.c.h.b16 %v2561
  %v2718 = vunpack.c.l.b16 %v2562
  %v2719 = vunpack.c.l.b16 %v2563
  %v2720 = vunpack.c.h.b16 %v2562
  %v2721 = vunpack.c.h.b16 %v2563
  %v2722 = vunpack.c.l.b16 %v2564
  %v2723 = vunpack.c.l.b16 %v2565
  %v2724 = vunpack.c.h.b16 %v2564
  %v2725 = vunpack.c.h.b16 %v2565
  %v2726 = vunpack.c.l.b16 %v2566
  %v2727 = vunpack.c.l.b16 %v2567
  %v2728 = vunpack.c.h.b16 %v2566
  %v2729 = vunpack.c.h.b16 %v2567
  %v2730 = vunpack.c.l.b16 %v2568
  %v2731 = vunpack.c.l.b16 %v2569
  %v2732 = vunpack.c.h.b16 %v2568
  %v2733 = vunpack.c.h.b16 %v2569
  %v2734 = vunpack.c.l.b16 %v2570
  %v2735 = vunpack.c.l.b16 %v2571
  %v2736 = vunpack.c.h.b16 %v2570
  %v2737 = vunpack.c.h.b16 %v2571
  %v2738 = vunpack.c.l.b16 %v2572
  %v2739 = vunpack.c.l.b16 %v2573
  %v2740 = vunpack.c.h.b16 %v2572
  %v2741 = vunpack.c.h.b16 %v2573
  %v2742 = vunpack.c.l.b16 %v2574
  %v2743 = vunpack.c.l.b16 %v2575
  %v2744 = vunpack.c.h.b16 %v2574
  %v2745 = vunpack.c.h.b16 %v2575
  %v2746 = vunpack.c.l.b16 %v2576
  %v2747 = vunpack.c.l.b16 %v2577
  %v2748 = vunpack.c.h.b16 %v2576
  %v2749 = vunpack.c.h.b16 %v2577
  %v2750 = vunpack.c.l.b16 %v2578
  %v2751 = vunpack.c.l.b16 %v2579
  %v2752 = vunpack.c.h.b16 %v2578
  %v2753 = vunpack.c.h.b16 %v2579
  %v2754 = vunpack.c.l.b16 %v2580
  %v2755 = vunpack.c.l.b16 %v2581
  %v2756 = vunpack.c.h.b16 %v2580
  %v2757 = vunpack.c.h.b16 %v2581
  %v2758 = vunpack.c.l.b16 %v2582
  %v2759 = vunpack.c.l.b16 %v2583
  %v2760 = vunpack.c.h.b16 %v2582
  %v2761 = vunpack.c.h.b16 %v2583
  %v2762 = vunpack.c.l.b16 %v2584
  %v2763 = vunpack.c.l.b16 %v2585
  %v2764 = vunpack.c.h.b16 %v2584
  %v2765 = vunpack.c.h.b16 %v2585
  %v2766 = vunpack.c.l.b16 %v2586
  %v2767 = vunpack.c.l.b16 %v2587
  %v2768 = vunpack.c.h.b16 %v2586
  %v2769 = vunpack.c.h.b16 %v2587
  %v2770 = vunpack.c.l.b16 %v2588
  %v2771 = vunpack.c.l.b16 %v2589
  %v2772 = vunpack.c.h.b16 %v2588
  %v2773 = vunpack.c.h.b16 %v2589
  %v2774 = vunpack.c.l.b16 %v2590
  %v2775 = vunpack.c.l.b16 %v2591
  %v2776 = vunpack.c.h.b16 %v2590
  %v2777 = vunpack.c.h.b16 %v2591
  %v2778 = vunpack.c.l.b16 %v2592
  %v2779 = vunpack.c.l.b16 %v2593
  %v2780 = vunpack.c.h.b16 %v2592
  %v2781 = vunpack.c.h.b16 %v2593
  %v2782 = vunpack.c.l.b16 %v2594
  %v2783 = vunpack.c.l.b16 %v2595
  %v2784 = vunpack.c.h.b16 %v2594
  %v2785 = vunpack.c.h.b16 %v2595
  %v2786 = vunpack.c.l.b16 %v2596
  %v2787 = vunpack.c.l.b16 %v2597
  %v2788 = vunpack.c.h.b16 %v2596
  %v2789 = vunpack.c.h.b16 %v2597
  %v2790 = vpack.c.b16 %v2663, %v2662
  %v2791 = vpack.c.b16 %v2665, %v2664
  %v2792 = vpack.c.b16 %v2667, %v2666
  %v2793 = vpack.c.b16 %v2669, %v2668
  %v2794 = vpack.c.b16 %v2671, %v2670
  %v2795 = vpack.c.b16 %v2673, %v2672
  %v2796 = vpack.c.b16 %v2675, %v2674
  %v2797 = vpack.c.b16 %v2677, %v2676
  %v2798 = vpack.c.b16 %v2679, %v2678
  %v2799 = vpack.c.b16 %v2681, %v2680
  %v2800 = vpack.c.b16 %v2683, %v2682
  %v2801 = vpack.c.b16 %v2685, %v2684
  %v2802 = vpack.c.b16 %v2687, %v2686
  %v2803 = vpack.c.b16 %v2689, %v2688
  %v2804 = vpack.c.b16 %v2691, %v2690
  %v2805 = vpack.c.b16 %v2693, %v2692
  %v2806 = vpack.c.b16 %v2695, %v2694
  %v2807 = vpack.c.b16 %v2697, %v2696
  %v2808 = vpack.c.b16 %v2699, %v2698
  %v2809 = vpack.c.b16 %v2701, %v2700
  %v2810 = vpack.c.b16 %v2703, %v2702
  %v2811 = vpack.c.b16 %v2705, %v2704
  %v2812 = vpack.c.b16 %v2707, %v2706
  %v2813 = vpack.c.b16 %v2709, %v2708
  %v2814 = vpack.c.b16 %v2711, %v2710
  %v2815 = vpack.c.b16 %v2713, %v2712
  %v2816 = vpack.c.b16 %v2715, %v2714
  %v2817 = vpack.c.b16 %v2717, %v2716
  %v2818 = vpack.c.b16 %v2719, %v2718
  %v2819 = vpack.c.b16 %v2721, %v2720
  %v2820 = vpack.c.b16 %v2723, %v2722
  %v2821 = vpack.c.b16 %v2725, %v2724
  %v2822 = vpack.c.b16 %v2727, %v2726
  %v2823 = vpack.c.b16 %v2729, %v2728
  %v2824 = vpack.c.b16 %v2731, %v2730
  %v2825 = vpack.c.b16 %v2733, %v2732
  %v2826 = vpack.c.b16 %v2735, %v2734
  %v2827 = vpack.c.b16 %v2737, %v2736
  %v2828 = vpack.c.b16 %v2739, %v2738
  %v2829 = vpack.c.b16 %v2741, %v2740
  %v2830 = vpack.c.b16 %v2743, %v2742
  %v2831 = vpack.c.b16 %v2745, %v2744
  %v2832 = vpack.c.b16 %v2747, %v2746
  %v2833 = vpack.c.b16 %v2749, %v2748
  %v2834 = vpack.c.b16 %v2751, %v2750
  %v2835 = vpack.c.b16 %v2753, %v2752
  %v2836 = vpack.c.b16 %v2755, %v2754
  %v2837 = vpack.c.b16 %v2757, %v2756
  %v2838 = vpack.c.b16 %v2759, %v2758
  %v2839 = vpack.c.b16 %v2761, %v2760
  %v2840 = vpack.c.b16 %v2763, %v2762
  %v2841 = vpack.c.b16 %v2765, %v2764
  %v2842 = vpack.c.b16 %v2767, %v2766
  %v2843 = vpack.c.b16 %v2769, %v2768
  %v2844 = vpack.c.b16 %v2771, %v2770
  %v2845 = vpack.c.b16 %v2773, %v2772
  %v2846 = vpack.c.b16 %v2775, %v2774
  %v2847 = vpack.c.b16 %v2777, %v2776
  %v2848 = vpack.c.b16 %v2779, %v2778
  %v2849 = vpack.c.b16 %v2781, %v2780
  %v2850 = vpack.c.b16 %v2783, %v2782
  %v2851 = vpack.c.b16 %v2785, %v2784
  %v2852 = vpack.c.b16 %v2787, %v2786
  %v2853 = vpack.c.b16 %v2789, %v2788
  %vm2918 = vcmask 1043456
  %vm2919 = vcmask 523268
  %vm2920 = vmor %vm2919, %vm2918
  %2921 = vst.msk [vmem:[%s5] sm:$0xff] %vm2920, %v2790
  %2922 = vst.msk [vmem:[%s5 + $0x8] sm:$0xff] %vm2920, %v2791
  %2923 = vst.msk [vmem:[%s5 + $0x10] sm:$0xff] %vm2920, %v2792
  %2924 = vst.msk [vmem:[%s5 + $0x18] sm:$0xff] %vm2920, %v2793
  %2925 = vst.msk [vmem:[%s5 + $0x20] sm:$0xff] %vm2920, %v2794
  %2926 = vst.msk [vmem:[%s5 + $0x28] sm:$0xff] %vm2920, %v2795
  %2927 = vst.msk [vmem:[%s5 + $0x30] sm:$0xff] %vm2920, %v2796
  %2928 = vst.msk [vmem:[%s5 + $0x38] sm:$0xff] %vm2920, %v2797
  %2929 = vst.msk [vmem:[%s5 + $0x40] sm:$0xff] %vm2920, %v2798
  %2930 = vst.msk [vmem:[%s5 + $0x48] sm:$0xff] %vm2920, %v2799
  %2931 = vst.msk [vmem:[%s5 + $0x50] sm:$0xff] %vm2920, %v2800
  %2932 = vst.msk [vmem:[%s5 + $0x58] sm:$0xff] %vm2920, %v2801
  %2933 = vst.msk [vmem:[%s5 + $0x60] sm:$0xff] %vm2920, %v2802
  %2934 = vst.msk [vmem:[%s5 + $0x68] sm:$0xff] %vm2920, %v2803
  %2935 = vst.msk [vmem:[%s5 + $0x70] sm:$0xff] %vm2920, %v2804
  %2936 = vst.msk [vmem:[%s5 + $0x78] sm:$0xff] %vm2920, %v2805
  %2937 = vst.msk [vmem:[%s5 + $0x80] sm:$0xff] %vm2920, %v2806
  %2938 = vst.msk [vmem:[%s5 + $0x88] sm:$0xff] %vm2920, %v2807
  %2939 = vst.msk [vmem:[%s5 + $0x90] sm:$0xff] %vm2920, %v2808
  %2940 = vst.msk [vmem:[%s5 + $0x98] sm:$0xff] %vm2920, %v2809
  %2941 = vst.msk [vmem:[%s5 + $0xa0] sm:$0xff] %vm2920, %v2810
  %2942 = vst.msk [vmem:[%s5 + $0xa8] sm:$0xff] %vm2920, %v2811
  %2943 = vst.msk [vmem:[%s5 + $0xb0] sm:$0xff] %vm2920, %v2812
  %2944 = vst.msk [vmem:[%s5 + $0xb8] sm:$0xff] %vm2920, %v2813
  %2945 = vst.msk [vmem:[%s5 + $0xc0] sm:$0xff] %vm2920, %v2814
  %2946 = vst.msk [vmem:[%s5 + $0xc8] sm:$0xff] %vm2920, %v2815
  %2947 = vst.msk [vmem:[%s5 + $0xd0] sm:$0xff] %vm2920, %v2816
  %2948 = vst.msk [vmem:[%s5 + $0xd8] sm:$0xff] %vm2920, %v2817
  %2949 = vst.msk [vmem:[%s5 + $0xe0] sm:$0xff] %vm2920, %v2818
  %2950 = vst.msk [vmem:[%s5 + $0xe8] sm:$0xff] %vm2920, %v2819
  %2951 = vst.msk [vmem:[%s5 + $0xf0] sm:$0xff] %vm2920, %v2820
  %2952 = vst.msk [vmem:[%s5 + $0xf8] sm:$0xff] %vm2920, %v2821
  %2953 = vst.msk [vmem:[%s5 + $0x100] sm:$0xff] %vm2920, %v2822
  %2954 = vst.msk [vmem:[%s5 + $0x108] sm:$0xff] %vm2920, %v2823
  %2955 = vst.msk [vmem:[%s5 + $0x110] sm:$0xff] %vm2920, %v2824
  %2956 = vst.msk [vmem:[%s5 + $0x118] sm:$0xff] %vm2920, %v2825
  %2957 = vst.msk [vmem:[%s5 + $0x120] sm:$0xff] %vm2920, %v2826
  %2958 = vst.msk [vmem:[%s5 + $0x128] sm:$0xff] %vm2920, %v2827
  %2959 = vst.msk [vmem:[%s5 + $0x130] sm:$0xff] %vm2920, %v2828
  %2960 = vst.msk [vmem:[%s5 + $0x138] sm:$0xff] %vm2920, %v2829
  %2961 = vst.msk [vmem:[%s5 + $0x140] sm:$0xff] %vm2920, %v2830
  %2962 = vst.msk [vmem:[%s5 + $0x148] sm:$0xff] %vm2920, %v2831
  %2963 = vst.msk [vmem:[%s5 + $0x150] sm:$0xff] %vm2920, %v2832
  %2964 = vst.msk [vmem:[%s5 + $0x158] sm:$0xff] %vm2920, %v2833
  %2965 = vst.msk [vmem:[%s5 + $0x160] sm:$0xff] %vm2920, %v2834
  %2966 = vst.msk [vmem:[%s5 + $0x168] sm:$0xff] %vm2920, %v2835
  %2967 = vst.msk [vmem:[%s5 + $0x170] sm:$0xff] %vm2920, %v2836
  %2968 = vst.msk [vmem:[%s5 + $0x178] sm:$0xff] %vm2920, %v2837
  %2969 = vst.msk [vmem:[%s5 + $0x180] sm:$0xff] %vm2920, %v2838
  %2970 = vst.msk [vmem:[%s5 + $0x188] sm:$0xff] %vm2920, %v2839
  %2971 = vst.msk [vmem:[%s5 + $0x190] sm:$0xff] %vm2920, %v2840
  %2972 = vst.msk [vmem:[%s5 + $0x198] sm:$0xff] %vm2920, %v2841
  %2973 = vst.msk [vmem:[%s5 + $0x1a0] sm:$0xff] %vm2920, %v2842
  %2974 = vst.msk [vmem:[%s5 + $0x1a8] sm:$0xff] %vm2920, %v2843
  %2975 = vst.msk [vmem:[%s5 + $0x1b0] sm:$0xff] %vm2920, %v2844
  %2976 = vst.msk [vmem:[%s5 + $0x1b8] sm:$0xff] %vm2920, %v2845
  %2977 = vst.msk [vmem:[%s5 + $0x1c0] sm:$0xff] %vm2920, %v2846
  %2978 = vst.msk [vmem:[%s5 + $0x1c8] sm:$0xff] %vm2920, %v2847
  %2979 = vst.msk [vmem:[%s5 + $0x1d0] sm:$0xff] %vm2920, %v2848
  %2980 = vst.msk [vmem:[%s5 + $0x1d8] sm:$0xff] %vm2920, %v2849
  %2981 = vst.msk [vmem:[%s5 + $0x1e0] sm:$0xff] %vm2920, %v2850
  %2982 = vst.msk [vmem:[%s5 + $0x1e8] sm:$0xff] %vm2920, %v2851
  %2983 = vst.msk [vmem:[%s5 + $0x1f0] sm:$0xff] %vm2920, %v2852
  %2984 = vst.msk [vmem:[%s5 + $0x1f8] sm:$0xff] %vm2920, %v2853
  // Predicated region
  $region22: #{tpu_custom_call.1} parent=0 // pred_check
    _
  $region23: #{tpu_custom_call.1} parent=0 // pred_check_branch
    %2986 = sbr.rel (0) target = $region25
  $region24: #{tpu_custom_call.1} parent=0 // pred_region
    _
  $region25: #{tpu_custom_call.1} parent=0 // pred_fallthru
    _
  // Predicated region
  $region26: #{tpu_custom_call.1} parent=0 // pred_check
    _
  $region27: #{tpu_custom_call.1} parent=0 // pred_check_branch
    %2988 = sbr.rel (0) target = $region29
  $region28: #{tpu_custom_call.1} parent=0 // pred_region
    _
  $region29: #{tpu_custom_call.1} parent=0 // pred_fallthru
    _

</llo_original>
